<compile_context>
chip_gen: v7x
topology: tpu7x:2x2x1
jax: 0.10.0
libtpu: 0.0.40
codegen_flags: <defaults>
</compile_context>

<pallas_src>
import jax
import jax.numpy as jnp
from jax import lax
from jax.experimental import pallas as pl
from jax.experimental.pallas import tpu as pltpu
import numpy as np


def _deepten_head_kernel(feat_ref, w1_ref, shift_ref, cw_ref, s_ref,
                         lw_ref, lb_ref, out_ref, xacc_ref):
    """Fused head: 1x1 conv (+folded BN) + ReLU + Encoding + L2-norm + Linear.

    Grid = (B, Cin // ct): axis 0 is parallel over images, axis 1 accumulates
    the 1x1 conv over Cin tiles into `xacc_ref` (f32 scratch, persists across
    the reduction axis); the encoding epilogue runs on the last Cin tile.

    feat_ref : (1, ct, HW)    in-dtype  NCHW features, one Cin tile of one image
    w1_ref   : (nk, ct, D)    bf16      conv weight (BN scale folded), resident
    shift_ref: (1, D)         f32       folded conv-bias / BN shift
    cw_ref   : (K, D)         f32       Encoding codewords
    s_ref    : (1, K)         f32       Encoding smoothing factors
    lw_ref   : (nclass, K, D) f32       Linear weight (torch [nclass, K*D] view)
    lb_ref   : (1, nclass)    f32       Linear bias
    out_ref  : (1, 1, nclass) f32       class logits for this image
    xacc_ref : (HW, D)        f32       conv accumulator scratch
    """
    k = pl.program_id(1)
    nk = pl.num_programs(1)

    @pl.when(k == 0)
    def _():
        xacc_ref[...] = jnp.zeros_like(xacc_ref)

    # ---- 1x1 conv (+folded BN), Cin-tiled: contract axis 0 of both operands
    # (MXU-native, no transpose). Features cast to bf16 in-register; f32 acc.
    f = feat_ref[0].astype(jnp.bfloat16)                        # (ct, HW)
    w = w1_ref[k]                                               # (ct, D) bf16
    xacc_ref[...] += lax.dot_general(
        f, w, (((0,), (0,)), ((), ())),
        preferred_element_type=jnp.float32)                     # (HW, D)

    # ---- epilogue: runs once per image, on the last Cin tile ----
    @pl.when(k == nk - 1)
    def _():
        x = jnp.maximum(xacc_ref[...] + shift_ref[...], 0.0)    # (HW, D) f32

        # Encoding: scaled L2 distances + softmax over K codewords (kept f32 —
        # the expanded x2 + c2 - 2xc form is cancellation sensitive).
        c = cw_ref[...]                                          # (K, D)
        x2 = jnp.sum(x * x, axis=-1, keepdims=True)              # (HW, 1)
        c2 = jnp.sum(c * c, axis=-1)[None, :]                    # (1, K)
        xc = lax.dot_general(x, c, (((1,), (1,)), ((), ())),
                             preferred_element_type=jnp.float32)  # (HW, K)
        sl = s_ref[...] * (x2 + c2 - 2.0 * xc)                   # (HW, K)
        m = jnp.max(sl, axis=-1, keepdims=True)
        p = jnp.exp(sl - m)
        a = p * pl.reciprocal(jnp.sum(p, axis=-1, keepdims=True), approx=True)

        # Aggregation: E[k,d] = sum_i a[i,k] * (x[i,d] - c[k,d]).
        # bf16 operands / f32 accumulation; contraction over axis 0 of both
        # operands (no XLU transpose).
        e = lax.dot_general(a.astype(jnp.bfloat16), x.astype(jnp.bfloat16),
                            (((0,), (0,)), ((), ())),
                            preferred_element_type=jnp.float32)   # (K, D)
        e = e - jnp.sum(a, axis=0)[:, None] * c                   # (K, D)

        # torch F.normalize(p=2, dim=1, eps=1e-12) over the flattened K*D vector.
        n2 = jnp.sum(jnp.sum(e * e, axis=1, keepdims=True),
                     axis=0, keepdims=True)                       # (1, 1)
        en = e * lax.rsqrt(jnp.maximum(n2, 1e-24))                # (K, D)

        # Linear against the lane-dense (nclass, K, D) weight: nclass is tiny,
        # so a VPU broadcast-multiply-reduce avoids any K*D relayout.
        t = jnp.sum(en[None, :, :] * lw_ref[...], axis=2)         # (nclass, K)
        logits = jnp.sum(t, axis=1)[None, :]                      # (1, nclass)
        out_ref[...] = (logits + lb_ref[...])[None]               # (1, 1, nclass)


def _vmem_capacity_bytes():
    """Chip-derived VMEM capacity (v5e/v6e 128 MiB, v7x 64 MiB per core)."""
    try:
        return int(pltpu.get_tpu_info().vmem_capacity_bytes)
    except Exception:
        return 64 * 1024 * 1024      # conservative fallback (v7x per-core)


def _pick_cin_tile(cin, hw, feat_itemsize, vmem_cap_bytes):
    """Cin tile: multiple of 128 (MXU contraction fill) whose double-buffered
    feature block fits a slice of VMEM; capped at 512 to keep DMA fine-grained
    and the reduction pipeline > 1 step at DeepTen sizes."""
    budget = max(vmem_cap_bytes // 8, 1 << 20)
    for ct in (512, 256, 128, 64, 32, 16, 8):
        if cin % ct == 0 and 2 * ct * hw * feat_itemsize <= budget:
            return ct
    return cin


def deepten_head(feats_nchw, params):
    """DeepTen head forward on backbone features [B, 2048, H, W] -> [B, nclass]."""
    B, Cin, H, W = feats_nchw.shape
    K, D = params["codewords"].shape
    nclass = params["lin_w"].shape[0]
    HW = H * W

    # NCHW consumed directly: [B, Cin, H, W] -> [B, Cin, HW] is a free reshape
    # (contiguous), so there is NO transpose / cast pre-pass over the largest
    # tensor. HW sits on the lane axis; Cin is the conv contraction axis.
    feats = feats_nchw.reshape(B, Cin, HW)
    feat_itemsize = feats.dtype.itemsize

    # Fold BatchNorm (inference) into the conv weight / bias:
    #   BN(conv(x)) = x @ (W * s) + (b - mean) * s + beta,  s = gamma/sqrt(var+eps)
    eps = 1e-5
    s = params["bn_gamma"] * lax.rsqrt(params["bn_var"] + eps)
    w1 = (params["conv_w"] * s[None, :]).astype(jnp.bfloat16)          # (Cin, D)
    shift = ((params["conv_b"] - params["bn_mean"]) * s
             + params["bn_beta"])[None, :]                             # (1, D)

    vmem_cap = _vmem_capacity_bytes()
    ct = _pick_cin_tile(Cin, HW, feat_itemsize, vmem_cap)
    nk = Cin // ct
    # w1 stays fully VMEM-resident (constant index map); the kernel indexes
    # tile k along the leading axis, so it is never re-fetched per image.
    w1 = w1.reshape(nk, ct, D)

    # Linear weight stays lane-dense: torch [nclass, K*D] viewed as [nclass, K, D].
    lw3 = params["lin_w"].reshape(nclass, K, D)
    lb = params["lin_b"][None, :]
    sc = params["scale"][None, :]

    # Explicit, chip-aware VMEM budget: resident constants + double-buffered
    # feature tile + f32 accumulator scratch (+ headroom for intermediates).
    resident = (w1.size * 2 + lw3.size * 4 + K * D * 4
                + (D + K + nclass + nclass) * 4)
    feat_db = 2 * ct * HW * feat_itemsize
    scratch = HW * D * 4
    vmem_limit = int(min(0.9 * vmem_cap,
                         max(16 * 1024 * 1024,
                             2 * (resident + feat_db + scratch) + (8 << 20))))

    cost = pl.CostEstimate(
        flops=2 * B * HW * Cin * D + 4 * B * HW * K * D,
        transcendentals=B * HW * K,
        bytes_accessed=(feats.size * feat_itemsize + w1.size * 2
                        + lw3.size * 4 + K * D * 4 + B * nclass * 4),
    )

    out = pl.pallas_call(
        _deepten_head_kernel,
        out_shape=jax.ShapeDtypeStruct((B, 1, nclass), jnp.float32),
        grid_spec=pltpu.PrefetchScalarGridSpec(
            num_scalar_prefetch=0,
            # batch axis parallel (>= 2 steps keeps both v7x TensorCores busy);
            # Cin reduction axis last, 'arbitrary'.
            grid=(B, nk),
            in_specs=[
                pl.BlockSpec((1, ct, HW), lambda b, k: (b, k, 0)),
                # grid-invariant operands: constant index maps -> DMA'd once,
                # kept resident in VMEM across the whole grid.
                pl.BlockSpec((nk, ct, D), lambda b, k: (0, 0, 0)),
                pl.BlockSpec((1, D), lambda b, k: (0, 0)),
                pl.BlockSpec((K, D), lambda b, k: (0, 0)),
                pl.BlockSpec((1, K), lambda b, k: (0, 0)),
                pl.BlockSpec((nclass, K, D), lambda b, k: (0, 0, 0)),
                pl.BlockSpec((1, nclass), lambda b, k: (0, 0)),
            ],
            out_specs=pl.BlockSpec((1, 1, nclass), lambda b, k: (b, 0, 0)),
            scratch_shapes=[pltpu.VMEM((HW, D), jnp.float32)],
        ),
        compiler_params=pltpu.CompilerParams(
            dimension_semantics=("parallel", "arbitrary"),
            vmem_limit_bytes=vmem_limit),
        cost_estimate=cost,
    )(feats, w1, shift, params["codewords"], sc, lw3, lb)

    return out.reshape(B, nclass)


def _reference_head(feats_nchw, params):
    """Pure-JAX reference (same bf16-operand contract for the conv as the kernel)."""
    B, Cin, H, W = feats_nchw.shape
    K, D = params["codewords"].shape
    eps = 1e-5
    s = params["bn_gamma"] * lax.rsqrt(params["bn_var"] + eps)
    w1 = (params["conv_w"] * s[None, :]).astype(jnp.bfloat16).astype(jnp.float32)
    shift = (params["conv_b"] - params["bn_mean"]) * s + params["bn_beta"]
    x = feats_nchw.reshape(B, Cin, H * W).astype(jnp.bfloat16).astype(jnp.float32)
    x = jnp.maximum(
        jnp.einsum("bci,cd->bid", x, w1,
                   precision=lax.Precision.HIGHEST) + shift, 0.0)       # [B,HW,D]
    c = params["codewords"]
    sl = params["scale"][None, None, :] * jnp.sum(
        (x[:, :, None, :] - c[None, None, :, :]) ** 2, axis=-1)         # [B,HW,K]
    a = jax.nn.softmax(sl, axis=-1)
    e = jnp.einsum("bik,bikd->bkd", a, x[:, :, None, :] - c[None, None, :, :],
                   precision=lax.Precision.HIGHEST)
    e = e.reshape(B, K * D)
    e = e / jnp.maximum(jnp.linalg.norm(e, axis=-1, keepdims=True), 1e-12)
    return jnp.matmul(e, params["lin_w"].T,
                      precision=lax.Precision.HIGHEST) + params["lin_b"]


def make_params(key, cin=2048, d=128, k=32, nclass=8):
    ks = jax.random.split(key, 8)
    std1 = 1.0 / float((k * d) ** 0.5)
    return {
        "conv_w": jax.random.normal(ks[0], (cin, d), jnp.float32) * 0.02,
        "conv_b": jax.random.normal(ks[1], (d,), jnp.float32) * 0.02,
        "bn_gamma": jnp.ones((d,), jnp.float32),
        "bn_beta": jnp.zeros((d,), jnp.float32),
        "bn_mean": jax.random.normal(ks[2], (d,), jnp.float32) * 0.1,
        "bn_var": jax.random.uniform(ks[3], (d,), jnp.float32, 0.5, 1.5),
        "codewords": jax.random.uniform(ks[4], (k, d), jnp.float32, -std1, std1),
        "scale": jax.random.uniform(ks[5], (k,), jnp.float32, -1.0, 0.0),
        # torch Linear layout [nclass, K*D] (already lane-dense as [nclass, K, D])
        "lin_w": jax.random.normal(ks[6], (nclass, k * d), jnp.float32) * 0.01,
        "lin_b": jax.random.normal(ks[7], (nclass,), jnp.float32) * 0.01,
    }


if __name__ == "__main__":
    key = jax.random.PRNGKey(0)
    kf, kp = jax.random.split(key)

    B, Cin, H, W, nclass = 2, 2048, 4, 4, 8      # backbone output at small spatial
    feats = jax.random.normal(kf, (B, Cin, H, W), jnp.float32)
    params = make_params(kp, cin=Cin, d=128, k=32, nclass=nclass)

    out = jax.block_until_ready(deepten_head(feats, params))

    ref = jax.block_until_ready(_reference_head(feats, params))
    np.testing.assert_allclose(np.asarray(out), np.asarray(ref),
                               rtol=2e-3, atol=2e-3)

    print("KERNEL_OK")
</pallas_src>

<mosaic_0001>
module attributes {stable_mosaic.version = 11 : i64} {
  func.func @_deepten_head_kernel(%arg0: i32, %arg1: i32, %arg2: memref<1x512x16xf32, #tpu.memory_space<vmem>>, %arg3: memref<4x512x128xbf16, #tpu.memory_space<vmem>>, %arg4: memref<1x128xf32, #tpu.memory_space<vmem>>, %arg5: memref<32x128xf32, #tpu.memory_space<vmem>>, %arg6: memref<1x32xf32, #tpu.memory_space<vmem>>, %arg7: memref<8x32x128xf32, #tpu.memory_space<vmem>>, %arg8: memref<1x8xf32, #tpu.memory_space<vmem>>, %arg9: memref<1x1x8xf32, #tpu.memory_space<vmem>>, %arg10: memref<16x128xf32, #tpu.memory_space<vmem>>) attributes {dimension_semantics = [#tpu.dimension_semantics<parallel>, #tpu.dimension_semantics<arbitrary>], iteration_bounds = array<i64: 2, 4>, scalar_prefetch = 0 : i64, scratch_operands = 1 : i64, tpu.core_type = #tpu.core_type<tc>, window_params = [{transform_indices = @transform_0, window_bounds = array<i64: 1, 512, 16>}, {pipeline_mode = #tpu.pipeline_mode<synchronous>, transform_indices = @transform_1, window_bounds = array<i64: 4, 512, 128>}, {pipeline_mode = #tpu.pipeline_mode<synchronous>, transform_indices = @transform_2, window_bounds = array<i64: 1, 128>}, {pipeline_mode = #tpu.pipeline_mode<synchronous>, transform_indices = @transform_3, window_bounds = array<i64: 32, 128>}, {pipeline_mode = #tpu.pipeline_mode<synchronous>, transform_indices = @transform_4, window_bounds = array<i64: 1, 32>}, {pipeline_mode = #tpu.pipeline_mode<synchronous>, transform_indices = @transform_5, window_bounds = array<i64: 8, 32, 128>}, {pipeline_mode = #tpu.pipeline_mode<synchronous>, transform_indices = @transform_6, window_bounds = array<i64: 1, 8>}, {transform_indices = @transform_7, window_bounds = array<i64: 1, 1, 8>}]} {
    %c0_i32 = arith.constant 0 : i32
    %0 = arith.cmpi eq, %arg1, %c0_i32 : i32
    %1 = arith.extui %0 : i1 to i32
    %c0_i32_0 = arith.constant 0 : i32
    %2 = arith.cmpi ne, %1, %c0_i32_0 : i32
    scf.if %2 {
      %cst_10 = arith.constant 0.000000e+00 : f32
      %16 = vector.broadcast %cst_10 : f32 to vector<16x128xf32>
      %c0_11 = arith.constant 0 : index
      %c0_12 = arith.constant 0 : index
      %17 = vector.load %arg10[%c0_11, %c0_12] : memref<16x128xf32, #tpu.memory_space<vmem>>, vector<16x128xf32>
      tpu.vector_store %arg10[%c0_11, %c0_12], %16 {strides = array<i32>} : memref<16x128xf32, #tpu.memory_space<vmem>>, vector<16x128xf32>,
    } else {
    }
    %c0 = arith.constant 0 : index
    %c0_1 = arith.constant 0 : index
    %c0_2 = arith.constant 0 : index
    %3 = vector.load %arg2[%c0, %c0_1, %c0_2] : memref<1x512x16xf32, #tpu.memory_space<vmem>>, vector<1x512x16xf32>
    %4 = vector.shape_cast %3 : vector<1x512x16xf32> to vector<512x16xf32>
    %5 = arith.truncf %4 : vector<512x16xf32> to vector<512x16xbf16>
    %6 = arith.index_cast %arg1 : i32 to index
    %c0_3 = arith.constant 0 : index
    %c0_4 = arith.constant 0 : index
    %7 = vector.load %arg3[%6, %c0_3, %c0_4] : memref<4x512x128xbf16, #tpu.memory_space<vmem>>, vector<1x512x128xbf16>
    %8 = vector.shape_cast %7 : vector<1x512x128xbf16> to vector<512x128xbf16>
    %c0_5 = arith.constant 0 : index
    %c0_6 = arith.constant 0 : index
    %9 = vector.load %arg10[%c0_5, %c0_6] : memref<16x128xf32, #tpu.memory_space<vmem>>, vector<16x128xf32>
    %cst = arith.constant dense<0.000000e+00> : vector<16x128xf32>
    %10 = tpu.matmul %5, %8, %cst {dimension_numbers = #tpu.dot_dimension_numbers<[0], [0], [1], [1], [0, 1, 1, 1], [], []>} : vector<512x16xbf16>, vector<512x128xbf16>, vector<16x128xf32> -> vector<16x128xf32>
    %11 = arith.addf %9, %10 : vector<16x128xf32>
    %c0_7 = arith.constant 0 : index
    %c0_8 = arith.constant 0 : index
    %12 = vector.load %arg10[%c0_7, %c0_8] : memref<16x128xf32, #tpu.memory_space<vmem>>, vector<16x128xf32>
    tpu.vector_store %arg10[%c0_7, %c0_8], %11 {strides = array<i32>} : memref<16x128xf32, #tpu.memory_space<vmem>>, vector<16x128xf32>,
    %c3_i32 = arith.constant 3 : i32
    %13 = arith.cmpi eq, %arg1, %c3_i32 : i32
    %14 = arith.extui %13 : i1 to i32
    %c0_i32_9 = arith.constant 0 : i32
    %15 = arith.cmpi ne, %14, %c0_i32_9 : i32
    scf.if %15 {
      %c0_10 = arith.constant 0 : index
      %c0_11 = arith.constant 0 : index
      %16 = vector.load %arg10[%c0_10, %c0_11] : memref<16x128xf32, #tpu.memory_space<vmem>>, vector<16x128xf32>
      %c0_12 = arith.constant 0 : index
      %c0_13 = arith.constant 0 : index
      %17 = vector.load %arg4[%c0_12, %c0_13] : memref<1x128xf32, #tpu.memory_space<vmem>>, vector<1x128xf32>
      %18 = vector.broadcast %17 : vector<1x128xf32> to vector<16x128xf32>
      %19 = arith.addf %16, %18 : vector<16x128xf32>
      %cst_14 = arith.constant 0.000000e+00 : f32
      %20 = vector.broadcast %cst_14 : f32 to vector<16x128xf32>
      %21 = arith.maximumf %19, %20 : vector<16x128xf32>
      %c0_15 = arith.constant 0 : index
      %c0_16 = arith.constant 0 : index
      %22 = vector.load %arg5[%c0_15, %c0_16] : memref<32x128xf32, #tpu.memory_space<vmem>>, vector<32x128xf32>
      %23 = arith.mulf %21, %21 : vector<16x128xf32>
      %cst_17 = arith.constant dense<0.000000e+00> : vector<16xf32>
      %24 = vector.multi_reduction <add>, %23, %cst_17 [1] : vector<16x128xf32> to vector<16xf32>
      %25 = vector.shape_cast %24 : vector<16xf32> to vector<16x1xf32>
      %26 = arith.mulf %22, %22 : vector<32x128xf32>
      %cst_18 = arith.constant dense<0.000000e+00> : vector<32xf32>
      %27 = vector.multi_reduction <add>, %26, %cst_18 [1] : vector<32x128xf32> to vector<32xf32>
      %28 = vector.shape_cast %27 : vector<32xf32> to vector<1x32xf32>
      %cst_19 = arith.constant dense<0.000000e+00> : vector<16x32xf32>
      %29 = tpu.matmul %21, %22, %cst_19 {dimension_numbers = #tpu.dot_dimension_numbers<[1], [1], [0], [0], [0, 0, 1, 0], [], []>} : vector<16x128xf32>, vector<32x128xf32>, vector<16x32xf32> -> vector<16x32xf32>
      %c0_20 = arith.constant 0 : index
      %c0_21 = arith.constant 0 : index
      %30 = vector.load %arg6[%c0_20, %c0_21] : memref<1x32xf32, #tpu.memory_space<vmem>>, vector<1x32xf32>
      %31 = vector.broadcast %25 : vector<16x1xf32> to vector<16x32xf32>
      %32 = vector.broadcast %28 : vector<1x32xf32> to vector<16x32xf32>
      %33 = arith.addf %31, %32 : vector<16x32xf32>
      %cst_22 = arith.constant 2.000000e+00 : f32
      %34 = vector.broadcast %cst_22 : f32 to vector<16x32xf32>
      %35 = arith.mulf %34, %29 : vector<16x32xf32>
      %36 = arith.subf %33, %35 : vector<16x32xf32>
      %37 = vector.broadcast %30 : vector<1x32xf32> to vector<16x32xf32>
      %38 = arith.mulf %37, %36 : vector<16x32xf32>
      %cst_23 = arith.constant dense<0xFF800000> : vector<16xf32>
      %39 = vector.multi_reduction <maximumf>, %38, %cst_23 [1] : vector<16x32xf32> to vector<16xf32>
      %40 = vector.shape_cast %39 : vector<16xf32> to vector<16x1xf32>
      %41 = vector.broadcast %40 : vector<16x1xf32> to vector<16x32xf32>
      %42 = arith.subf %38, %41 : vector<16x32xf32>
      %43 = math.exp %42 : vector<16x32xf32>
      %cst_24 = arith.constant dense<0.000000e+00> : vector<16xf32>
      %44 = vector.multi_reduction <add>, %43, %cst_24 [1] : vector<16x32xf32> to vector<16xf32>
      %45 = vector.shape_cast %44 : vector<16xf32> to vector<16x1xf32>
      %46 = tpu.reciprocal %45 {approx = true} : vector<16x1xf32> -> vector<16x1xf32>
      %47 = vector.broadcast %46 : vector<16x1xf32> to vector<16x32xf32>
      %48 = arith.mulf %43, %47 : vector<16x32xf32>
      %49 = arith.truncf %48 : vector<16x32xf32> to vector<16x32xbf16>
      %50 = arith.truncf %21 : vector<16x128xf32> to vector<16x128xbf16>
      %cst_25 = arith.constant dense<0.000000e+00> : vector<32x128xf32>
      %51 = tpu.matmul %49, %50, %cst_25 {dimension_numbers = #tpu.dot_dimension_numbers<[0], [0], [1], [1], [0, 1, 1, 1], [], []>} : vector<16x32xbf16>, vector<16x128xbf16>, vector<32x128xf32> -> vector<32x128xf32>
      %cst_26 = arith.constant dense<0.000000e+00> : vector<32xf32>
      %52 = vector.multi_reduction <add>, %48, %cst_26 [0] : vector<16x32xf32> to vector<32xf32>
      %53 = vector.shape_cast %52 : vector<32xf32> to vector<32x1xf32>
      %54 = vector.broadcast %53 : vector<32x1xf32> to vector<32x128xf32>
      %55 = arith.mulf %54, %22 : vector<32x128xf32>
      %56 = arith.subf %51, %55 : vector<32x128xf32>
      %57 = arith.mulf %56, %56 : vector<32x128xf32>
      %cst_27 = arith.constant dense<0.000000e+00> : vector<32xf32>
      %58 = vector.multi_reduction <add>, %57, %cst_27 [1] : vector<32x128xf32> to vector<32xf32>
      %59 = vector.shape_cast %58 : vector<32xf32> to vector<32x1xf32>
      %cst_28 = arith.constant dense<0.000000e+00> : vector<1xf32>
      %60 = vector.multi_reduction <add>, %59, %cst_28 [0] : vector<32x1xf32> to vector<1xf32>
      %61 = vector.shape_cast %60 : vector<1xf32> to vector<1x1xf32>
      %cst_29 = arith.constant 1.000000e-24 : f32
      %62 = vector.broadcast %cst_29 : f32 to vector<1x1xf32>
      %63 = arith.maximumf %61, %62 : vector<1x1xf32>
      %64 = math.rsqrt %63 : vector<1x1xf32>
      %65 = vector.broadcast %64 : vector<1x1xf32> to vector<32x128xf32>
      %66 = arith.mulf %56, %65 : vector<32x128xf32>
      %67 = vector.shape_cast %66 : vector<32x128xf32> to vector<1x32x128xf32>
      %c0_30 = arith.constant 0 : index
      %c0_31 = arith.constant 0 : index
      %c0_32 = arith.constant 0 : index
      %68 = vector.load %arg7[%c0_30, %c0_31, %c0_32] : memref<8x32x128xf32, #tpu.memory_space<vmem>>, vector<8x32x128xf32>
      %69 = vector.broadcast %67 : vector<1x32x128xf32> to vector<8x32x128xf32>
      %70 = arith.mulf %69, %68 : vector<8x32x128xf32>
      %cst_33 = arith.constant dense<0.000000e+00> : vector<8x32xf32>
      %71 = vector.multi_reduction <add>, %70, %cst_33 [2] : vector<8x32x128xf32> to vector<8x32xf32>
      %cst_34 = arith.constant dense<0.000000e+00> : vector<8xf32>
      %72 = vector.multi_reduction <add>, %71, %cst_34 [1] : vector<8x32xf32> to vector<8xf32>
      %73 = vector.shape_cast %72 : vector<8xf32> to vector<1x8xf32>
      %c0_35 = arith.constant 0 : index
      %c0_36 = arith.constant 0 : index
      %74 = vector.load %arg8[%c0_35, %c0_36] : memref<1x8xf32, #tpu.memory_space<vmem>>, vector<1x8xf32>
      %75 = arith.addf %73, %74 : vector<1x8xf32>
      %76 = vector.shape_cast %75 : vector<1x8xf32> to vector<1x1x8xf32>
      %c0_37 = arith.constant 0 : index
      %c0_38 = arith.constant 0 : index
      %c0_39 = arith.constant 0 : index
      %77 = vector.load %arg9[%c0_37, %c0_38, %c0_39] : memref<1x1x8xf32, #tpu.memory_space<vmem>>, vector<1x1x8xf32>
      tpu.vector_store %arg9[%c0_37, %c0_38, %c0_39], %76 {strides = array<i32>} : memref<1x1x8xf32, #tpu.memory_space<vmem>>, vector<1x1x8xf32>,
    } else {
    }
    return
  }
  func.func @transform_0(%arg0: i32, %arg1: i32) -> (i32, i32, i32) {
    %c0_i32 = arith.constant 0 : i32
    %c0_i32_0 = arith.constant 0 : i32
    return %arg0, %arg1, %c0_i32 : i32, i32, i32
  }
  func.func @transform_1(%arg0: i32, %arg1: i32) -> (i32, i32, i32) {
    %c0_i32 = arith.constant 0 : i32
    %c0_i32_0 = arith.constant 0 : i32
    %c0_i32_1 = arith.constant 0 : i32
    %c0_i32_2 = arith.constant 0 : i32
    return %c0_i32, %c0_i32_0, %c0_i32_1 : i32, i32, i32
  }
  func.func @transform_2(%arg0: i32, %arg1: i32) -> (i32, i32) {
    %c0_i32 = arith.constant 0 : i32
    %c0_i32_0 = arith.constant 0 : i32
    %c0_i32_1 = arith.constant 0 : i32
    return %c0_i32, %c0_i32_0 : i32, i32
  }
  func.func @transform_3(%arg0: i32, %arg1: i32) -> (i32, i32) {
    %c0_i32 = arith.constant 0 : i32
    %c0_i32_0 = arith.constant 0 : i32
    %c0_i32_1 = arith.constant 0 : i32
    return %c0_i32, %c0_i32_0 : i32, i32
  }
  func.func @transform_4(%arg0: i32, %arg1: i32) -> (i32, i32) {
    %c0_i32 = arith.constant 0 : i32
    %c0_i32_0 = arith.constant 0 : i32
    %c0_i32_1 = arith.constant 0 : i32
    return %c0_i32, %c0_i32_0 : i32, i32
  }
  func.func @transform_5(%arg0: i32, %arg1: i32) -> (i32, i32, i32) {
    %c0_i32 = arith.constant 0 : i32
    %c0_i32_0 = arith.constant 0 : i32
    %c0_i32_1 = arith.constant 0 : i32
    %c0_i32_2 = arith.constant 0 : i32
    return %c0_i32, %c0_i32_0, %c0_i32_1 : i32, i32, i32
  }
  func.func @transform_6(%arg0: i32, %arg1: i32) -> (i32, i32) {
    %c0_i32 = arith.constant 0 : i32
    %c0_i32_0 = arith.constant 0 : i32
    %c0_i32_1 = arith.constant 0 : i32
    return %c0_i32, %c0_i32_0 : i32, i32
  }
  func.func @transform_7(%arg0: i32, %arg1: i32) -> (i32, i32, i32) {
    %c0_i32 = arith.constant 0 : i32
    %c0_i32_0 = arith.constant 0 : i32
    %c0_i32_1 = arith.constant 0 : i32
    return %arg0, %c0_i32, %c0_i32_0 : i32, i32, i32
  }
}

</mosaic_0001>

<llo_original>
// kernel: tpu_custom_call.1
$region0: #{tpu_custom_call.1}
  #allocation0 [shape = 'u32[]', space=smem, size = 0x4, offset = 0x4, fixed_abs, tag = 'smem constant byte address 0x4 - core index']
  #allocation1 [shape = 'u32[144,128]{1,0:T(1,128)}', space=vmem, size = 0x12000, scoped, tag = 'internal scratch']
  #allocation2 [shape = 'f32[16,128]{1,0:T(8,128)}', space=vmem, size = 0x2000, scoped, tag = 'scratch operand']
  %s0 = inlined_call_operand.vmem [shape: f32[2,2048,16], index: 0, kind: input, shape index: {}]
  %s1 = inlined_call_operand.vmem [shape: bf16[4,512,128], index: 1, kind: input, shape index: {}]
  %s2 = inlined_call_operand.vmem [shape: f32[1,128], index: 2, kind: input, shape index: {}]
  %s3 = inlined_call_operand.vmem [shape: f32[32,128], index: 3, kind: input, shape index: {}]
  %s4 = inlined_call_operand.vmem [shape: f32[1,32], index: 4, kind: input, shape index: {}]
  %s5 = inlined_call_operand.vmem [shape: f32[8,32,128], index: 5, kind: input, shape index: {}]
  %s6 = inlined_call_operand.vmem [shape: f32[1,8], index: 6, kind: input, shape index: {}]
  %s7 = inlined_call_operand.hbm [shape: f32[2,1,8], index: 7, kind: output, shape index: {}]
  %s8 = sld [smem:[#allocation0]]
  $region69: #{tpu_custom_call.1} parent=0
    _
  %s10 = ssub.s32 1, %s8
  %s11 = scalar_select 0, %s10, %s8
  $region1: #{tpu_custom_call.1} parent=0
    #allocation3 [shape = 'u8[1024]{0}', space=vmem, size = 0x400, scoped, tag = 'output window, operand 0']
    #allocation4 [shape = 's32[2]{0}', space=sflag, size = 0x8, scoped, tag = 'scoped memory for tpu_custom_call.1']
    %12 = vsyncpa [#allocation4], 0
    %s13 = scalar_lea.sflag [#allocation4], 1
    %14 = vsyncpa %s13, 0
    loop: start=0, step=1, limit=10
    $region2: #{tpu_custom_call.1} parent=1 // loop_pre_header
      _
    $region3: #{tpu_custom_call.1} parent=1 // loop_header
      %s16 = sphi 0, %s20
      %p17 = scmp.ge.s32.totalorder %s16, 10
      %s23 = sphi 0, %s35
      %s24 = sphi 0, %s31
      %s25 = sphi 0, %s23
      %s26 = sphi 0, %s24
      %s27 = sphi 0, %s25
      %s28 = sphi 0, %s26
      %s40 = sphi 0, %s42
      %s43 = sphi 0, %s40
      %s44 = sphi 0, %s43
      %s60 = sphi 0, %s44
      %s64 = sphi 0, %s64
      %s66 = sphi 0, %s64
      %s67 = sphi 0, %s66
      %s81 = sphi 0, %s67
      %s85 = sphi 0, %s85
      %s87 = sphi 0, %s85
      %s88 = sphi 0, %s87
      %s102 = sphi 0, %s88
      %s106 = sphi 0, %s106
      %s108 = sphi 0, %s106
      %s109 = sphi 0, %s108
      %s123 = sphi 0, %s109
      %s127 = sphi 0, %s127
      %s129 = sphi 0, %s127
      %s130 = sphi 0, %s129
      %s144 = sphi 0, %s130
      %s148 = sphi 0, %s148
      %s150 = sphi 0, %s148
      %s151 = sphi 0, %s150
      %s165 = sphi 0, %s151
      %s169 = sphi 0, %s169
      %s171 = sphi 0, %s169
      %s172 = sphi 0, %s171
      %s186 = sphi 0, %s172
      %s192 = sphi 0, %s194
      %s195 = sphi 0, %s192
      %s196 = sphi 0, %s195
      %s212 = sphi 0, %s196
    $region4: #{tpu_custom_call.1} parent=1 // loop_header_branch
      %19 = sbr.rel (%p17) target = $region8
    $region5: #{tpu_custom_call.1} parent=1 // loop_body
      %s21 = ssub.s32 %s16, 1
      %s22 = ssub.s32 %s16, 2
      %s29 = sadd.s32 1, %s24
      %p30 = scmp.ge.s32.totalorder %s29, 4
      %s31 = scalar_select %p30, 0, %s29
      %s32 = sadd.s32 1, %s23
      %s33 = scalar_select %p30, %s32, %s23
      %p34 = scmp.ge.s32.totalorder %s33, 2
      %s35 = scalar_select %p34, 0, %s33
      %s36 = ssub.s32 %s23, %s35
      %s37 = ssub.s32 %s24, %s31
      %s38 = sor.u32 %s36, %s37
      %p39 = scmp.eq.s32.totalorder %s38, 0
      %s41 = sadd.s32 %s40, 1
      %s42 = scalar_select %p39, %s40, %s41
      %p45 = pneg %p39
      %p46 = scmp.eq.s32.totalorder %s16, 7
      %p47 = por %p45, %p46
      %p48 = scmp.ne.s32.totalorder %s40, %s43
      %p49 = scmp.eq.s32.totalorder %s16, 0
      %p50 = por %p48, %p49
      %p51 = scmp.ne.s32.totalorder %s40, %s43
      %p52 = scmp.eq.s32.totalorder %s21, 7
      %p53 = por %p51, %p52
      %p54 = scmp.ne.s32.totalorder %s43, %s44
      %p55 = scmp.eq.s32.totalorder %s21, 0
      %p56 = por %p54, %p55
      %p57 = scmp.ne.s32.totalorder %s43, %s44
      %p58 = scmp.eq.s32.totalorder %s22, 7
      %p59 = por %p57, %p58
      %p61 = scmp.ne.s32.totalorder %s44, %s60
      %p62 = scmp.eq.s32.totalorder %s22, 0
      %p63 = por %p61, %p62
      %s65 = sadd.s32 %s64, 1
      %p68 = scmp.eq.s32.totalorder %s16, 7
      %p69 = scmp.ne.s32.totalorder %s64, %s66
      %p70 = scmp.eq.s32.totalorder %s16, 0
      %p71 = por %p69, %p70
      %p72 = scmp.ne.s32.totalorder %s64, %s66
      %p73 = scmp.eq.s32.totalorder %s21, 7
      %p74 = por %p72, %p73
      %p75 = scmp.ne.s32.totalorder %s66, %s67
      %p76 = scmp.eq.s32.totalorder %s21, 0
      %p77 = por %p75, %p76
      %p78 = scmp.ne.s32.totalorder %s66, %s67
      %p79 = scmp.eq.s32.totalorder %s22, 7
      %p80 = por %p78, %p79
      %p82 = scmp.ne.s32.totalorder %s67, %s81
      %p83 = scmp.eq.s32.totalorder %s22, 0
      %p84 = por %p82, %p83
      %s86 = sadd.s32 %s85, 1
      %p89 = scmp.eq.s32.totalorder %s16, 7
      %p90 = scmp.ne.s32.totalorder %s85, %s87
      %p91 = scmp.eq.s32.totalorder %s16, 0
      %p92 = por %p90, %p91
      %p93 = scmp.ne.s32.totalorder %s85, %s87
      %p94 = scmp.eq.s32.totalorder %s21, 7
      %p95 = por %p93, %p94
      %p96 = scmp.ne.s32.totalorder %s87, %s88
      %p97 = scmp.eq.s32.totalorder %s21, 0
      %p98 = por %p96, %p97
      %p99 = scmp.ne.s32.totalorder %s87, %s88
      %p100 = scmp.eq.s32.totalorder %s22, 7
      %p101 = por %p99, %p100
      %p103 = scmp.ne.s32.totalorder %s88, %s102
      %p104 = scmp.eq.s32.totalorder %s22, 0
      %p105 = por %p103, %p104
      %s107 = sadd.s32 %s106, 1
      %p110 = scmp.eq.s32.totalorder %s16, 7
      %p111 = scmp.ne.s32.totalorder %s106, %s108
      %p112 = scmp.eq.s32.totalorder %s16, 0
      %p113 = por %p111, %p112
      %p114 = scmp.ne.s32.totalorder %s106, %s108
      %p115 = scmp.eq.s32.totalorder %s21, 7
      %p116 = por %p114, %p115
      %p117 = scmp.ne.s32.totalorder %s108, %s109
      %p118 = scmp.eq.s32.totalorder %s21, 0
      %p119 = por %p117, %p118
      %p120 = scmp.ne.s32.totalorder %s108, %s109
      %p121 = scmp.eq.s32.totalorder %s22, 7
      %p122 = por %p120, %p121
      %p124 = scmp.ne.s32.totalorder %s109, %s123
      %p125 = scmp.eq.s32.totalorder %s22, 0
      %p126 = por %p124, %p125
      %s128 = sadd.s32 %s127, 1
      %p131 = scmp.eq.s32.totalorder %s16, 7
      %p132 = scmp.ne.s32.totalorder %s127, %s129
      %p133 = scmp.eq.s32.totalorder %s16, 0
      %p134 = por %p132, %p133
      %p135 = scmp.ne.s32.totalorder %s127, %s129
      %p136 = scmp.eq.s32.totalorder %s21, 7
      %p137 = por %p135, %p136
      %p138 = scmp.ne.s32.totalorder %s129, %s130
      %p139 = scmp.eq.s32.totalorder %s21, 0
      %p140 = por %p138, %p139
      %p141 = scmp.ne.s32.totalorder %s129, %s130
      %p142 = scmp.eq.s32.totalorder %s22, 7
      %p143 = por %p141, %p142
      %p145 = scmp.ne.s32.totalorder %s130, %s144
      %p146 = scmp.eq.s32.totalorder %s22, 0
      %p147 = por %p145, %p146
      %s149 = sadd.s32 %s148, 1
      %p152 = scmp.eq.s32.totalorder %s16, 7
      %p153 = scmp.ne.s32.totalorder %s148, %s150
      %p154 = scmp.eq.s32.totalorder %s16, 0
      %p155 = por %p153, %p154
      %p156 = scmp.ne.s32.totalorder %s148, %s150
      %p157 = scmp.eq.s32.totalorder %s21, 7
      %p158 = por %p156, %p157
      %p159 = scmp.ne.s32.totalorder %s150, %s151
      %p160 = scmp.eq.s32.totalorder %s21, 0
      %p161 = por %p159, %p160
      %p162 = scmp.ne.s32.totalorder %s150, %s151
      %p163 = scmp.eq.s32.totalorder %s22, 7
      %p164 = por %p162, %p163
      %p166 = scmp.ne.s32.totalorder %s151, %s165
      %p167 = scmp.eq.s32.totalorder %s22, 0
      %p168 = por %p166, %p167
      %s170 = sadd.s32 %s169, 1
      %p173 = scmp.eq.s32.totalorder %s16, 7
      %p174 = scmp.ne.s32.totalorder %s169, %s171
      %p175 = scmp.eq.s32.totalorder %s16, 0
      %p176 = por %p174, %p175
      %p177 = scmp.ne.s32.totalorder %s169, %s171
      %p178 = scmp.eq.s32.totalorder %s21, 7
      %p179 = por %p177, %p178
      %p180 = scmp.ne.s32.totalorder %s171, %s172
      %p181 = scmp.eq.s32.totalorder %s21, 0
      %p182 = por %p180, %p181
      %p183 = scmp.ne.s32.totalorder %s171, %s172
      %p184 = scmp.eq.s32.totalorder %s22, 7
      %p185 = por %p183, %p184
      %p187 = scmp.ne.s32.totalorder %s172, %s186
      %p188 = scmp.eq.s32.totalorder %s22, 0
      %p189 = por %p187, %p188
      %s190 = ssub.s32 %s23, %s35
      %p191 = scmp.eq.s32.totalorder %s190, 0
      %s193 = sadd.s32 %s192, 1
      %s194 = scalar_select %p191, %s192, %s193
      %p197 = pneg %p191
      %p198 = scmp.eq.s32.totalorder %s16, 7
      %p199 = por %p197, %p198
      %p200 = scmp.ne.s32.totalorder %s192, %s195
      %p201 = scmp.eq.s32.totalorder %s16, 0
      %p202 = por %p200, %p201
      %p203 = scmp.ne.s32.totalorder %s192, %s195
      %p204 = scmp.eq.s32.totalorder %s21, 7
      %p205 = por %p203, %p204
      %p206 = scmp.ne.s32.totalorder %s195, %s196
      %p207 = scmp.eq.s32.totalorder %s21, 0
      %p208 = por %p206, %p207
      %p209 = scmp.ne.s32.totalorder %s195, %s196
      %p210 = scmp.eq.s32.totalorder %s22, 7
      %p211 = por %p209, %p210
      %p213 = scmp.ne.s32.totalorder %s196, %s212
      %p214 = scmp.eq.s32.totalorder %s22, 0
      %p215 = por %p213, %p214
      %p216 = scmp.le.s32.totalorder 1, %s16
      %p217 = scmp.lt.s32.totalorder %s16, 9
      %p218 = pnand %p216, %p217
      %p219 = pneg %p218
      // Predicated region
      $region9: #{tpu_custom_call.1} parent=5 // pred_check
        _
      $region10: #{tpu_custom_call.1} parent=5 // pred_check_branch
        %221 = sbr.rel (%p218) target = $region12
      $region11: #{tpu_custom_call.1} parent=5 // pred_region
        %s222 = ssub.s32 %s16, 1
        // Predicated region
        $region13: #{tpu_custom_call.1} parent=11 // pred_check
          %p223 = pneg %p77
        $region14: #{tpu_custom_call.1} parent=11 // pred_check_branch
          %225 = sbr.rel (%p223) target = $region16
        $region15: #{tpu_custom_call.1} parent=11 // pred_region
          _
        $region16: #{tpu_custom_call.1} parent=11 // pred_fallthru
          _
        // Predicated region
        $region17: #{tpu_custom_call.1} parent=11 // pred_check
          %p226 = pneg %p98
        $region18: #{tpu_custom_call.1} parent=11 // pred_check_branch
          %228 = sbr.rel (%p226) target = $region20
        $region19: #{tpu_custom_call.1} parent=11 // pred_region
          _
        $region20: #{tpu_custom_call.1} parent=11 // pred_fallthru
          _
        // Predicated region
        $region21: #{tpu_custom_call.1} parent=11 // pred_check
          %p229 = pneg %p119
        $region22: #{tpu_custom_call.1} parent=11 // pred_check_branch
          %231 = sbr.rel (%p229) target = $region24
        $region23: #{tpu_custom_call.1} parent=11 // pred_region
          _
        $region24: #{tpu_custom_call.1} parent=11 // pred_fallthru
          _
        // Predicated region
        $region25: #{tpu_custom_call.1} parent=11 // pred_check
          %p232 = pneg %p140
        $region26: #{tpu_custom_call.1} parent=11 // pred_check_branch
          %234 = sbr.rel (%p232) target = $region28
        $region27: #{tpu_custom_call.1} parent=11 // pred_region
          _
        $region28: #{tpu_custom_call.1} parent=11 // pred_fallthru
          _
        // Predicated region
        $region29: #{tpu_custom_call.1} parent=11 // pred_check
          %p235 = pneg %p161
        $region30: #{tpu_custom_call.1} parent=11 // pred_check_branch
          %237 = sbr.rel (%p235) target = $region32
        $region31: #{tpu_custom_call.1} parent=11 // pred_region
          _
        $region32: #{tpu_custom_call.1} parent=11 // pred_fallthru
          _
        // Predicated region
        $region33: #{tpu_custom_call.1} parent=11 // pred_check
          %p238 = pneg %p182
        $region34: #{tpu_custom_call.1} parent=11 // pred_check_branch
          %240 = sbr.rel (%p238) target = $region36
        $region35: #{tpu_custom_call.1} parent=11 // pred_region
          _
        $region36: #{tpu_custom_call.1} parent=11 // pred_fallthru
          _
      $region12: #{tpu_custom_call.1} parent=5 // pred_fallthru
        _
      %p241 = scmp.lt.s32.totalorder %s16, 8
      // Predicated region
      $region37: #{tpu_custom_call.1} parent=5 // pred_check
        %p242 = pneg %p241
      $region38: #{tpu_custom_call.1} parent=5 // pred_check_branch
        %244 = sbr.rel (%p242) target = $region40
      $region39: #{tpu_custom_call.1} parent=5 // pred_region
        // Predicated region
        $region41: #{tpu_custom_call.1} parent=39 // pred_check
          %p245 = pneg %p50
        $region42: #{tpu_custom_call.1} parent=39 // pred_check_branch
          %247 = sbr.rel (%p245) target = $region44
        $region43: #{tpu_custom_call.1} parent=39 // pred_region
          %s248 = smul.u32 64, %s24
          %p249 = scmp.lt.s32.totalorder %s23, 1
          %s250 = scalar_select %p249, %s23, 1
          %p251 = scmp.lt.s32.totalorder %s248, 255
          %s252 = scalar_select %p251, %s248, 255
          %s253 = smul.addr %s250, 256
          %s254 = sadd.s32 %s252, %s253
          %s255 = smul.addr %s254, 8
          %s256 = scalar_lea.vmem %s0, %s255
          %s257 = smul.u32 64, %s24
        $region44: #{tpu_custom_call.1} parent=39 // pred_fallthru
          _
      $region40: #{tpu_custom_call.1} parent=5 // pred_fallthru
        _
      %p258 = scmp.le.s32.totalorder 1, %s16
      %p259 = scmp.lt.s32.totalorder %s16, 9
      %p260 = pnand %p258, %p259
      %p261 = pneg %p260
      // Predicated region
      $region45: #{tpu_custom_call.1} parent=5 // pred_check
        _
      $region46: #{tpu_custom_call.1} parent=5 // pred_check_branch
        %263 = sbr.rel (%p260) target = $region48
      $region47: #{tpu_custom_call.1} parent=5 // pred_region
        %s264 = ssub.s32 %s16, 1
        %s265 = smul.u32 64, %s26
        %p266 = scmp.lt.s32.totalorder %s25, 1
        %s267 = scalar_select %p266, %s25, 1
        %p268 = scmp.lt.s32.totalorder %s265, 255
        %s269 = scalar_select %p268, %s265, 255
        %s270 = smul.addr %s267, 256
        %s271 = sadd.s32 %s269, %s270
        %s272 = smul.addr %s271, 8
        %s273 = scalar_lea.vmem %s0, %s272
        %p274 = pneg %p56
        %p275 = pneg %p53
        %p276 = pneg %p77
        %p277 = pneg %p74
        %p278 = pneg %p98
        %p279 = pneg %p95
        %p280 = pneg %p119
        %p281 = pneg %p116
        %p282 = pneg %p140
        %p283 = pneg %p137
        %p284 = pneg %p161
        %p285 = pneg %p158
        %p286 = pneg %p182
        %p287 = pneg %p179
        %p288 = pneg %p208
        %p289 = pneg %p205
        %s290 = sand.u32 %s195, 1
        %s291 = scalar_lea.sflag [#allocation4], %s290
        %s292 = sand.u32 %s195, 1
        %s293 = scalar_lea.vmem [#allocation3], %s292
        %s294 = smul.u32 64, %s26
        %p295 = scmp.lt.s32.totalorder %s25, 1
        %s296 = scalar_select %p295, %s25, 1
        %p297 = scmp.lt.s32.totalorder %s294, 255
        %s298 = scalar_select %p297, %s294, 255
        %s299 = smul.addr %s296, 256
        %s300 = sadd.s32 %s298, %s299
        %s301 = smul.addr %s300, 8
        %s302 = scalar_lea.vmem %s0, %s301
        %s303 = smul.u32 64, %s26
        %p305 = scmp.eq.s32.totalorder %s26, 0
        // Predicated region
        $region49: #{tpu_custom_call.1} parent=47 // pred_check
          %p306 = pneg %p305
        $region50: #{tpu_custom_call.1} parent=47 // pred_check_branch
          %308 = sbr.rel (%p306) target = $region52
        $region51: #{tpu_custom_call.1} parent=47 // pred_region
          %309 = vst [vmem:[#allocation2] sm:$0xff] 0.0
          %310 = vst [vmem:[#allocation2 + $0x8] sm:$0xff] 0.0
        $region52: #{tpu_custom_call.1} parent=47 // pred_fallthru
          _
        %v311 = vld [vmem:[%s302] sm:$0xff]
        %v312 = vld [vmem:[%s302 + $0x8] sm:$0xff]
        %v313 = vld [vmem:[%s302 + $0x10] sm:$0xff]
        %v314 = vld [vmem:[%s302 + $0x18] sm:$0xff]
        %v315 = vld [vmem:[%s302 + $0x20] sm:$0xff]
        %v316 = vld [vmem:[%s302 + $0x28] sm:$0xff]
        %v317 = vld [vmem:[%s302 + $0x30] sm:$0xff]
        %v318 = vld [vmem:[%s302 + $0x38] sm:$0xff]
        %v319 = vld [vmem:[%s302 + $0x40] sm:$0xff]
        %v320 = vld [vmem:[%s302 + $0x48] sm:$0xff]
        %v321 = vld [vmem:[%s302 + $0x50] sm:$0xff]
        %v322 = vld [vmem:[%s302 + $0x58] sm:$0xff]
        %v323 = vld [vmem:[%s302 + $0x60] sm:$0xff]
        %v324 = vld [vmem:[%s302 + $0x68] sm:$0xff]
        %v325 = vld [vmem:[%s302 + $0x70] sm:$0xff]
        %v326 = vld [vmem:[%s302 + $0x78] sm:$0xff]
        %v327 = vld [vmem:[%s302 + $0x80] sm:$0xff]
        %v328 = vld [vmem:[%s302 + $0x88] sm:$0xff]
        %v329 = vld [vmem:[%s302 + $0x90] sm:$0xff]
        %v330 = vld [vmem:[%s302 + $0x98] sm:$0xff]
        %v331 = vld [vmem:[%s302 + $0xa0] sm:$0xff]
        %v332 = vld [vmem:[%s302 + $0xa8] sm:$0xff]
        %v333 = vld [vmem:[%s302 + $0xb0] sm:$0xff]
        %v334 = vld [vmem:[%s302 + $0xb8] sm:$0xff]
        %v335 = vld [vmem:[%s302 + $0xc0] sm:$0xff]
        %v336 = vld [vmem:[%s302 + $0xc8] sm:$0xff]
        %v337 = vld [vmem:[%s302 + $0xd0] sm:$0xff]
        %v338 = vld [vmem:[%s302 + $0xd8] sm:$0xff]
        %v339 = vld [vmem:[%s302 + $0xe0] sm:$0xff]
        %v340 = vld [vmem:[%s302 + $0xe8] sm:$0xff]
        %v341 = vld [vmem:[%s302 + $0xf0] sm:$0xff]
        %v342 = vld [vmem:[%s302 + $0xf8] sm:$0xff]
        %v343 = vld [vmem:[%s302 + $0x100] sm:$0xff]
        %v344 = vld [vmem:[%s302 + $0x108] sm:$0xff]
        %v345 = vld [vmem:[%s302 + $0x110] sm:$0xff]
        %v346 = vld [vmem:[%s302 + $0x118] sm:$0xff]
        %v347 = vld [vmem:[%s302 + $0x120] sm:$0xff]
        %v348 = vld [vmem:[%s302 + $0x128] sm:$0xff]
        %v349 = vld [vmem:[%s302 + $0x130] sm:$0xff]
        %v350 = vld [vmem:[%s302 + $0x138] sm:$0xff]
        %v351 = vld [vmem:[%s302 + $0x140] sm:$0xff]
        %v352 = vld [vmem:[%s302 + $0x148] sm:$0xff]
        %v353 = vld [vmem:[%s302 + $0x150] sm:$0xff]
        %v354 = vld [vmem:[%s302 + $0x158] sm:$0xff]
        %v355 = vld [vmem:[%s302 + $0x160] sm:$0xff]
        %v356 = vld [vmem:[%s302 + $0x168] sm:$0xff]
        %v357 = vld [vmem:[%s302 + $0x170] sm:$0xff]
        %v358 = vld [vmem:[%s302 + $0x178] sm:$0xff]
        %v359 = vld [vmem:[%s302 + $0x180] sm:$0xff]
        %v360 = vld [vmem:[%s302 + $0x188] sm:$0xff]
        %v361 = vld [vmem:[%s302 + $0x190] sm:$0xff]
        %v362 = vld [vmem:[%s302 + $0x198] sm:$0xff]
        %v363 = vld [vmem:[%s302 + $0x1a0] sm:$0xff]
        %v364 = vld [vmem:[%s302 + $0x1a8] sm:$0xff]
        %v365 = vld [vmem:[%s302 + $0x1b0] sm:$0xff]
        %v366 = vld [vmem:[%s302 + $0x1b8] sm:$0xff]
        %v367 = vld [vmem:[%s302 + $0x1c0] sm:$0xff]
        %v368 = vld [vmem:[%s302 + $0x1c8] sm:$0xff]
        %v369 = vld [vmem:[%s302 + $0x1d0] sm:$0xff]
        %v370 = vld [vmem:[%s302 + $0x1d8] sm:$0xff]
        %v371 = vld [vmem:[%s302 + $0x1e0] sm:$0xff]
        %v372 = vld [vmem:[%s302 + $0x1e8] sm:$0xff]
        %v373 = vld [vmem:[%s302 + $0x1f0] sm:$0xff]
        %v374 = vld [vmem:[%s302 + $0x1f8] sm:$0xff]
        %v375 = vpack.c.bf16 %v312, %v311
        %v376 = vpack.c.bf16 %v314, %v313
        %v377 = vpack.c.bf16 %v316, %v315
        %v378 = vpack.c.bf16 %v318, %v317
        %v379 = vpack.c.bf16 %v320, %v319
        %v380 = vpack.c.bf16 %v322, %v321
        %v381 = vpack.c.bf16 %v324, %v323
        %v382 = vpack.c.bf16 %v326, %v325
        %v383 = vpack.c.bf16 %v328, %v327
        %v384 = vpack.c.bf16 %v330, %v329
        %v385 = vpack.c.bf16 %v332, %v331
        %v386 = vpack.c.bf16 %v334, %v333
        %v387 = vpack.c.bf16 %v336, %v335
        %v388 = vpack.c.bf16 %v338, %v337
        %v389 = vpack.c.bf16 %v340, %v339
        %v390 = vpack.c.bf16 %v342, %v341
        %v391 = vpack.c.bf16 %v344, %v343
        %v392 = vpack.c.bf16 %v346, %v345
        %v393 = vpack.c.bf16 %v348, %v347
        %v394 = vpack.c.bf16 %v350, %v349
        %v395 = vpack.c.bf16 %v352, %v351
        %v396 = vpack.c.bf16 %v354, %v353
        %v397 = vpack.c.bf16 %v356, %v355
        %v398 = vpack.c.bf16 %v358, %v357
        %v399 = vpack.c.bf16 %v360, %v359
        %v400 = vpack.c.bf16 %v362, %v361
        %v401 = vpack.c.bf16 %v364, %v363
        %v402 = vpack.c.bf16 %v366, %v365
        %v403 = vpack.c.bf16 %v368, %v367
        %v404 = vpack.c.bf16 %v370, %v369
        %v405 = vpack.c.bf16 %v372, %v371
        %v406 = vpack.c.bf16 %v374, %v373
        %s407 = smul.u32 %s26, 64
        %s408 = smul.addr %s407, 4
        %s409 = scalar_lea.vmem %s1, %s408
        %v410 = vld [vmem:[%s409] sm:$0xf]
        %v411 = vld [vmem:[%s409 + $0x4] sm:$0xf]
        %v412 = vld [vmem:[%s409 + $0x8] sm:$0xf]
        %v413 = vld [vmem:[%s409 + $0xc] sm:$0xf]
        %v414 = vld [vmem:[%s409 + $0x10] sm:$0xf]
        %v415 = vld [vmem:[%s409 + $0x14] sm:$0xf]
        %v416 = vld [vmem:[%s409 + $0x18] sm:$0xf]
        %v417 = vld [vmem:[%s409 + $0x1c] sm:$0xf]
        %v418 = vld [vmem:[%s409 + $0x20] sm:$0xf]
        %v419 = vld [vmem:[%s409 + $0x24] sm:$0xf]
        %v420 = vld [vmem:[%s409 + $0x28] sm:$0xf]
        %v421 = vld [vmem:[%s409 + $0x2c] sm:$0xf]
        %v422 = vld [vmem:[%s409 + $0x30] sm:$0xf]
        %v423 = vld [vmem:[%s409 + $0x34] sm:$0xf]
        %v424 = vld [vmem:[%s409 + $0x38] sm:$0xf]
        %v425 = vld [vmem:[%s409 + $0x3c] sm:$0xf]
        %v426 = vld [vmem:[%s409 + $0x40] sm:$0xf]
        %v427 = vld [vmem:[%s409 + $0x44] sm:$0xf]
        %v428 = vld [vmem:[%s409 + $0x48] sm:$0xf]
        %v429 = vld [vmem:[%s409 + $0x4c] sm:$0xf]
        %v430 = vld [vmem:[%s409 + $0x50] sm:$0xf]
        %v431 = vld [vmem:[%s409 + $0x54] sm:$0xf]
        %v432 = vld [vmem:[%s409 + $0x58] sm:$0xf]
        %v433 = vld [vmem:[%s409 + $0x5c] sm:$0xf]
        %v434 = vld [vmem:[%s409 + $0x60] sm:$0xf]
        %v435 = vld [vmem:[%s409 + $0x64] sm:$0xf]
        %v436 = vld [vmem:[%s409 + $0x68] sm:$0xf]
        %v437 = vld [vmem:[%s409 + $0x6c] sm:$0xf]
        %v438 = vld [vmem:[%s409 + $0x70] sm:$0xf]
        %v439 = vld [vmem:[%s409 + $0x74] sm:$0xf]
        %v440 = vld [vmem:[%s409 + $0x78] sm:$0xf]
        %v441 = vld [vmem:[%s409 + $0x7c] sm:$0xf]
        %v442 = vld [vmem:[%s409 + $0x80] sm:$0xf]
        %v443 = vld [vmem:[%s409 + $0x84] sm:$0xf]
        %v444 = vld [vmem:[%s409 + $0x88] sm:$0xf]
        %v445 = vld [vmem:[%s409 + $0x8c] sm:$0xf]
        %v446 = vld [vmem:[%s409 + $0x90] sm:$0xf]
        %v447 = vld [vmem:[%s409 + $0x94] sm:$0xf]
        %v448 = vld [vmem:[%s409 + $0x98] sm:$0xf]
        %v449 = vld [vmem:[%s409 + $0x9c] sm:$0xf]
        %v450 = vld [vmem:[%s409 + $0xa0] sm:$0xf]
        %v451 = vld [vmem:[%s409 + $0xa4] sm:$0xf]
        %v452 = vld [vmem:[%s409 + $0xa8] sm:$0xf]
        %v453 = vld [vmem:[%s409 + $0xac] sm:$0xf]
        %v454 = vld [vmem:[%s409 + $0xb0] sm:$0xf]
        %v455 = vld [vmem:[%s409 + $0xb4] sm:$0xf]
        %v456 = vld [vmem:[%s409 + $0xb8] sm:$0xf]
        %v457 = vld [vmem:[%s409 + $0xbc] sm:$0xf]
        %v458 = vld [vmem:[%s409 + $0xc0] sm:$0xf]
        %v459 = vld [vmem:[%s409 + $0xc4] sm:$0xf]
        %v460 = vld [vmem:[%s409 + $0xc8] sm:$0xf]
        %v461 = vld [vmem:[%s409 + $0xcc] sm:$0xf]
        %v462 = vld [vmem:[%s409 + $0xd0] sm:$0xf]
        %v463 = vld [vmem:[%s409 + $0xd4] sm:$0xf]
        %v464 = vld [vmem:[%s409 + $0xd8] sm:$0xf]
        %v465 = vld [vmem:[%s409 + $0xdc] sm:$0xf]
        %v466 = vld [vmem:[%s409 + $0xe0] sm:$0xf]
        %v467 = vld [vmem:[%s409 + $0xe4] sm:$0xf]
        %v468 = vld [vmem:[%s409 + $0xe8] sm:$0xf]
        %v469 = vld [vmem:[%s409 + $0xec] sm:$0xf]
        %v470 = vld [vmem:[%s409 + $0xf0] sm:$0xf]
        %v471 = vld [vmem:[%s409 + $0xf4] sm:$0xf]
        %v472 = vld [vmem:[%s409 + $0xf8] sm:$0xf]
        %v473 = vld [vmem:[%s409 + $0xfc] sm:$0xf]
        %v474 = vld [vmem:[#allocation2] sm:$0xff]
        %v475 = vld [vmem:[#allocation2 + $0x8] sm:$0xff]
        %476 = vxpose.xlu0.c.b16.start [1/8] %v375, 128
        %477 = vxpose.xlu0.c.b16.cont [2/8] %v376, 128
        %478 = vxpose.xlu0.c.b16.cont [3/8] %v377, 128
        %479 = vxpose.xlu0.c.b16.cont [4/8] %v378, 128
        %480 = vxpose.xlu0.c.b16.cont [5/8] %v379, 128
        %481 = vxpose.xlu0.c.b16.cont [6/8] %v380, 128
        %482 = vxpose.xlu0.c.b16.cont [7/8] %v381, 128
        %483 = vxpose.xlu0.c.b16.end [8/8] %v382, 128
        %v484 = vpop.trf.xlu0
        %v485 = vpop.trf.xlu0
        %v486 = vpop.trf.xlu0
        %v487 = vpop.trf.xlu0
        %v488 = vpop.trf.xlu0
        %v489 = vpop.trf.xlu0
        %v490 = vpop.trf.xlu0
        %v491 = vpop.trf.xlu0
        %492 = vxpose.xlu0.c.b16.start [1/8] %v383, 128
        %493 = vxpose.xlu0.c.b16.cont [2/8] %v384, 128
        %494 = vxpose.xlu0.c.b16.cont [3/8] %v385, 128
        %495 = vxpose.xlu0.c.b16.cont [4/8] %v386, 128
        %496 = vxpose.xlu0.c.b16.cont [5/8] %v387, 128
        %497 = vxpose.xlu0.c.b16.cont [6/8] %v388, 128
        %498 = vxpose.xlu0.c.b16.cont [7/8] %v389, 128
        %499 = vxpose.xlu0.c.b16.end [8/8] %v390, 128
        %v500 = vpop.trf.xlu0
        %v501 = vpop.trf.xlu0
        %v502 = vpop.trf.xlu0
        %v503 = vpop.trf.xlu0
        %v504 = vpop.trf.xlu0
        %v505 = vpop.trf.xlu0
        %v506 = vpop.trf.xlu0
        %v507 = vpop.trf.xlu0
        %508 = vxpose.xlu0.c.b16.start [1/8] %v391, 128
        %509 = vxpose.xlu0.c.b16.cont [2/8] %v392, 128
        %510 = vxpose.xlu0.c.b16.cont [3/8] %v393, 128
        %511 = vxpose.xlu0.c.b16.cont [4/8] %v394, 128
        %512 = vxpose.xlu0.c.b16.cont [5/8] %v395, 128
        %513 = vxpose.xlu0.c.b16.cont [6/8] %v396, 128
        %514 = vxpose.xlu0.c.b16.cont [7/8] %v397, 128
        %515 = vxpose.xlu0.c.b16.end [8/8] %v398, 128
        %v516 = vpop.trf.xlu0
        %v517 = vpop.trf.xlu0
        %v518 = vpop.trf.xlu0
        %v519 = vpop.trf.xlu0
        %v520 = vpop.trf.xlu0
        %v521 = vpop.trf.xlu0
        %v522 = vpop.trf.xlu0
        %v523 = vpop.trf.xlu0
        %524 = vxpose.xlu0.c.b16.start [1/8] %v399, 128
        %525 = vxpose.xlu0.c.b16.cont [2/8] %v400, 128
        %526 = vxpose.xlu0.c.b16.cont [3/8] %v401, 128
        %527 = vxpose.xlu0.c.b16.cont [4/8] %v402, 128
        %528 = vxpose.xlu0.c.b16.cont [5/8] %v403, 128
        %529 = vxpose.xlu0.c.b16.cont [6/8] %v404, 128
        %530 = vxpose.xlu0.c.b16.cont [7/8] %v405, 128
        %531 = vxpose.xlu0.c.b16.end [8/8] %v406, 128
        %v532 = vpop.trf.xlu0
        %v533 = vpop.trf.xlu0
        %v534 = vpop.trf.xlu0
        %v535 = vpop.trf.xlu0
        %v536 = vpop.trf.xlu0
        %v537 = vpop.trf.xlu0
        %v538 = vpop.trf.xlu0
        %v539 = vpop.trf.xlu0
        %v604 = vunpack.c.l.b16 %v410
        %v605 = vunpack.c.l.b16 %v411
        %v606 = vunpack.c.l.b16 %v412
        %v607 = vunpack.c.l.b16 %v413
        %v608 = vunpack.c.l.b16 %v414
        %v609 = vunpack.c.l.b16 %v415
        %v610 = vunpack.c.l.b16 %v416
        %v611 = vunpack.c.l.b16 %v417
        %v612 = vunpack.c.l.b16 %v418
        %v613 = vunpack.c.l.b16 %v419
        %v614 = vunpack.c.l.b16 %v420
        %v615 = vunpack.c.l.b16 %v421
        %v616 = vunpack.c.l.b16 %v422
        %v617 = vunpack.c.l.b16 %v423
        %v618 = vunpack.c.l.b16 %v424
        %v619 = vunpack.c.l.b16 %v425
        %v620 = vunpack.c.l.b16 %v426
        %v621 = vunpack.c.l.b16 %v427
        %v622 = vunpack.c.l.b16 %v428
        %v623 = vunpack.c.l.b16 %v429
        %v624 = vunpack.c.l.b16 %v430
        %v625 = vunpack.c.l.b16 %v431
        %v626 = vunpack.c.l.b16 %v432
        %v627 = vunpack.c.l.b16 %v433
        %v628 = vunpack.c.l.b16 %v434
        %v629 = vunpack.c.l.b16 %v435
        %v630 = vunpack.c.l.b16 %v436
        %v631 = vunpack.c.l.b16 %v437
        %v632 = vunpack.c.l.b16 %v438
        %v633 = vunpack.c.l.b16 %v439
        %v634 = vunpack.c.l.b16 %v440
        %v635 = vunpack.c.l.b16 %v441
        %v636 = vunpack.c.l.b16 %v442
        %v637 = vunpack.c.l.b16 %v443
        %v638 = vunpack.c.l.b16 %v444
        %v639 = vunpack.c.l.b16 %v445
        %v640 = vunpack.c.l.b16 %v446
        %v641 = vunpack.c.l.b16 %v447
        %v642 = vunpack.c.l.b16 %v448
        %v643 = vunpack.c.l.b16 %v449
        %v644 = vunpack.c.l.b16 %v450
        %v645 = vunpack.c.l.b16 %v451
        %v646 = vunpack.c.l.b16 %v452
        %v647 = vunpack.c.l.b16 %v453
        %v648 = vunpack.c.l.b16 %v454
        %v649 = vunpack.c.l.b16 %v455
        %v650 = vunpack.c.l.b16 %v456
        %v651 = vunpack.c.l.b16 %v457
        %v652 = vunpack.c.l.b16 %v458
        %v653 = vunpack.c.l.b16 %v459
        %v654 = vunpack.c.l.b16 %v460
        %v655 = vunpack.c.l.b16 %v461
        %v656 = vunpack.c.l.b16 %v462
        %v657 = vunpack.c.l.b16 %v463
        %v658 = vunpack.c.l.b16 %v464
        %v659 = vunpack.c.l.b16 %v465
        %v660 = vunpack.c.l.b16 %v466
        %v661 = vunpack.c.l.b16 %v467
        %v662 = vunpack.c.l.b16 %v468
        %v663 = vunpack.c.l.b16 %v469
        %v664 = vunpack.c.l.b16 %v470
        %v665 = vunpack.c.l.b16 %v471
        %v666 = vunpack.c.l.b16 %v472
        %v667 = vunpack.c.l.b16 %v473
        %v668 = vpack.c.b16 %v605, %v604
        %v669 = vpack.c.b16 %v607, %v606
        %v670 = vpack.c.b16 %v609, %v608
        %v671 = vpack.c.b16 %v611, %v610
        %v672 = vpack.c.b16 %v613, %v612
        %v673 = vpack.c.b16 %v615, %v614
        %v674 = vpack.c.b16 %v617, %v616
        %v675 = vpack.c.b16 %v619, %v618
        %v676 = vpack.c.b16 %v621, %v620
        %v677 = vpack.c.b16 %v623, %v622
        %v678 = vpack.c.b16 %v625, %v624
        %v679 = vpack.c.b16 %v627, %v626
        %v680 = vpack.c.b16 %v629, %v628
        %v681 = vpack.c.b16 %v631, %v630
        %v682 = vpack.c.b16 %v633, %v632
        %v683 = vpack.c.b16 %v635, %v634
        %v684 = vpack.c.b16 %v637, %v636
        %v685 = vpack.c.b16 %v639, %v638
        %v686 = vpack.c.b16 %v641, %v640
        %v687 = vpack.c.b16 %v643, %v642
        %v688 = vpack.c.b16 %v645, %v644
        %v689 = vpack.c.b16 %v647, %v646
        %v690 = vpack.c.b16 %v649, %v648
        %v691 = vpack.c.b16 %v651, %v650
        %v692 = vpack.c.b16 %v653, %v652
        %v693 = vpack.c.b16 %v655, %v654
        %v694 = vpack.c.b16 %v657, %v656
        %v695 = vpack.c.b16 %v659, %v658
        %v696 = vpack.c.b16 %v661, %v660
        %v697 = vpack.c.b16 %v663, %v662
        %v698 = vpack.c.b16 %v665, %v664
        %v699 = vpack.c.b16 %v667, %v666
        %732 = vmatprep.subr.bf16.mxu0 0
        %733 = vmatpush1.bf16.msra.mxu0 %v668
        %734 = vmatprep.subr.bf16.mxu0 0
        %735 = vmatpush1.bf16.msra.mxu0 %v669
        %736 = vmatprep.subr.bf16.mxu0 0
        %737 = vmatpush1.bf16.msra.mxu0 %v670
        %738 = vmatprep.subr.bf16.mxu0 0
        %739 = vmatpush1.bf16.msra.mxu0 %v671
        %740 = vmatprep.subr.bf16.mxu0 0
        %741 = vmatpush1.bf16.msra.mxu0 %v672
        %742 = vmatprep.subr.bf16.mxu0 0
        %743 = vmatpush1.bf16.msra.mxu0 %v673
        %744 = vmatprep.subr.bf16.mxu0 0
        %745 = vmatpush1.bf16.msra.mxu0 %v674
        %746 = vmatprep.subr.bf16.mxu0 0
        %747 = vmatpush1.bf16.msra.mxu0 %v675
        %748 = vmatprep.subr.bf16.mxu0 0
        %749 = vmatpush1.bf16.msra.mxu0 %v676
        %750 = vmatprep.subr.bf16.mxu0 0
        %751 = vmatpush1.bf16.msra.mxu0 %v677
        %752 = vmatprep.subr.bf16.mxu0 0
        %753 = vmatpush1.bf16.msra.mxu0 %v678
        %754 = vmatprep.subr.bf16.mxu0 0
        %755 = vmatpush1.bf16.msra.mxu0 %v679
        %756 = vmatprep.subr.bf16.mxu0 0
        %757 = vmatpush1.bf16.msra.mxu0 %v680
        %758 = vmatprep.subr.bf16.mxu0 0
        %759 = vmatpush1.bf16.msra.mxu0 %v681
        %760 = vmatprep.subr.bf16.mxu0 0
        %761 = vmatpush1.bf16.msra.mxu0 %v682
        %762 = vmatprep.subr.bf16.mxu0 0
        %763 = vmatpush1.bf16.msra.mxu0 %v683
        %764 = vmatprep.mubr.bf16.mxu0 %v500
        %765 = vmatmul.mubr.bf16.gmra.mrb[0].mxu0 %v484
        %v766 = vpop.f32.mrb[0].mxu0
        %v767 = vadd.f32 0.0, %v766
        %v768 = vpop.f32.mrb[0].mxu0
        %v769 = vpop.f32.mrb[0].mxu0
        %v770 = vadd.f32 0.0, %v769
        %v771 = vpop.f32.mrb[0].mxu0
        %772 = vdwg.mxu0
        %773 = vmatprep.subr.bf16.mxu0 0
        %774 = vmatpush1.bf16.msra.mxu0 %v684
        %775 = vmatprep.subr.bf16.mxu0 0
        %776 = vmatpush1.bf16.msra.mxu0 %v685
        %777 = vmatprep.subr.bf16.mxu0 0
        %778 = vmatpush1.bf16.msra.mxu0 %v686
        %779 = vmatprep.subr.bf16.mxu0 0
        %780 = vmatpush1.bf16.msra.mxu0 %v687
        %781 = vmatprep.subr.bf16.mxu0 0
        %782 = vmatpush1.bf16.msra.mxu0 %v688
        %783 = vmatprep.subr.bf16.mxu0 0
        %784 = vmatpush1.bf16.msra.mxu0 %v689
        %785 = vmatprep.subr.bf16.mxu0 0
        %786 = vmatpush1.bf16.msra.mxu0 %v690
        %787 = vmatprep.subr.bf16.mxu0 0
        %788 = vmatpush1.bf16.msra.mxu0 %v691
        %789 = vmatprep.subr.bf16.mxu0 0
        %790 = vmatpush1.bf16.msra.mxu0 %v692
        %791 = vmatprep.subr.bf16.mxu0 0
        %792 = vmatpush1.bf16.msra.mxu0 %v693
        %793 = vmatprep.subr.bf16.mxu0 0
        %794 = vmatpush1.bf16.msra.mxu0 %v694
        %795 = vmatprep.subr.bf16.mxu0 0
        %796 = vmatpush1.bf16.msra.mxu0 %v695
        %797 = vmatprep.subr.bf16.mxu0 0
        %798 = vmatpush1.bf16.msra.mxu0 %v696
        %799 = vmatprep.subr.bf16.mxu0 0
        %800 = vmatpush1.bf16.msra.mxu0 %v697
        %801 = vmatprep.subr.bf16.mxu0 0
        %802 = vmatpush1.bf16.msra.mxu0 %v698
        %803 = vmatprep.subr.bf16.mxu0 0
        %804 = vmatpush1.bf16.msra.mxu0 %v699
        %805 = vmatprep.mubr.bf16.mxu0 %v532
        %806 = vmatmul.mubr.bf16.gmra.mrb[0].mxu0 %v516
        %v807 = vpop.f32.mrb[0].mxu0
        %v808 = vadd.f32 %v767, %v807
        %v809 = vpop.f32.mrb[0].mxu0
        %v810 = vpop.f32.mrb[0].mxu0
        %v811 = vadd.f32 %v770, %v810
        %v812 = vpop.f32.mrb[0].mxu0
        %813 = vdwg.mxu0
        %v814 = vadd.f32 %v474, %v808
        %v815 = vadd.f32 %v475, %v811
        %816 = vst [vmem:[#allocation2] sm:$0xff] %v814
        %817 = vst [vmem:[#allocation2 + $0x8] sm:$0xff] %v815
        %p818 = scmp.eq.s32.totalorder %s26, 3
        // Predicated region
        $region53: #{tpu_custom_call.1} parent=47 // pred_check
          %p819 = pneg %p818
        $region54: #{tpu_custom_call.1} parent=47 // pred_check_branch
          %821 = sbr.rel (%p819) target = $region56
        $region55: #{tpu_custom_call.1} parent=47 // pred_region
          %v822 = vld [vmem:[#allocation2] sm:$0xff]
          %v823 = vld [vmem:[#allocation2 + $0x8] sm:$0xff]
          %v824 = vld [vmem:[%s2] sm:$0x1]
          %v826 = vlaneseq
          %v827 = vshrl.u32 %v826, 7
          %v828 = vsub.s32 0, %v827
          %v829 = vrot.slane %v824, %v828
          %v831 = vadd.f32 %v822, %v829
          %v832 = vadd.f32 %v823, %v829
          %v833 = vmax.f32 %v831, 0.0
          %v834 = vmax.f32 %v832, 0.0
          %v835 = vld [vmem:[%s3] sm:$0xff]
          %v836 = vld [vmem:[%s3 + $0x8] sm:$0xff]
          %v837 = vld [vmem:[%s3 + $0x10] sm:$0xff]
          %v838 = vld [vmem:[%s3 + $0x18] sm:$0xff]
          %v839 = vmul.f32 %v833, %v833
          %v840 = vmul.f32 %v834, %v834
          %841 = vadd.xlane.f32.xlu0 %v839
          %v842 = vpop.xlane.xlu0 %841
          %843 = vadd.xlane.f32.xlu0 %v840
          %v844 = vpop.xlane.xlu0 %843
          %v845 = vmul.f32 %v835, %v835
          %v846 = vmul.f32 %v836, %v836
          %v847 = vmul.f32 %v837, %v837
          %v848 = vmul.f32 %v838, %v838
          %849 = vadd.xlane.f32.xlu0 %v845
          %v850 = vpop.xlane.xlu0 %849
          %851 = vadd.xlane.f32.xlu0 %v846
          %v852 = vpop.xlane.xlu0 %851
          %853 = vadd.xlane.f32.xlu0 %v847
          %v854 = vpop.xlane.xlu0 %853
          %855 = vadd.xlane.f32.xlu0 %v848
          %v856 = vpop.xlane.xlu0 %855
          %857 = vmatprep.subr.mxu0 0.0
          %858 = vmatpush1.xpose.msra.mxu0 %v835
          %859 = vmatprep.subr.mxu0 0.0
          %860 = vmatpush1.xpose.msra.mxu0 %v836
          %861 = vmatprep.subr.mxu0 0.0
          %862 = vmatpush1.xpose.msra.mxu0 %v837
          %863 = vmatprep.subr.mxu0 0.0
          %864 = vmatpush1.xpose.msra.mxu0 %v838
          %865 = vmatprep.subr.mxu0 0.0
          %866 = vmatpush1.xpose.msra.mxu0 0.0
          %867 = vmatprep.subr.mxu0 0.0
          %868 = vmatpush1.xpose.msra.mxu0 0.0
          %869 = vmatprep.subr.mxu0 0.0
          %870 = vmatpush1.xpose.msra.mxu0 0.0
          %871 = vmatprep.subr.mxu0 0.0
          %872 = vmatpush1.xpose.msra.mxu0 0.0
          %873 = vmatprep.subr.mxu0 0.0
          %874 = vmatpush1.xpose.msra.mxu0 0.0
          %875 = vmatprep.subr.mxu0 0.0
          %876 = vmatpush1.xpose.msra.mxu0 0.0
          %877 = vmatprep.subr.mxu0 0.0
          %878 = vmatpush1.xpose.msra.mxu0 0.0
          %879 = vmatprep.subr.mxu0 0.0
          %880 = vmatpush1.xpose.msra.mxu0 0.0
          %881 = vmatprep.subr.mxu0 0.0
          %882 = vmatpush1.xpose.msra.mxu0 0.0
          %883 = vmatprep.subr.mxu0 0.0
          %884 = vmatpush1.xpose.msra.mxu0 0.0
          %885 = vmatprep.subr.mxu0 0.0
          %886 = vmatpush1.xpose.msra.mxu0 0.0
          %887 = vmatprep.subr.mxu0 0.0
          %888 = vmatpush1.xpose.msra.mxu0 0.0
          %889 = vmatprep.subr.mxu0 0.0
          %890 = vmatpush1.xpose.msra.mxu0 0.0
          %891 = vmatprep.subr.mxu0 0.0
          %892 = vmatpush1.xpose.msra.mxu0 0.0
          %893 = vmatprep.subr.mxu0 0.0
          %894 = vmatpush1.xpose.msra.mxu0 0.0
          %895 = vmatprep.subr.mxu0 0.0
          %896 = vmatpush1.xpose.msra.mxu0 0.0
          %897 = vmatprep.subr.mxu0 0.0
          %898 = vmatpush1.xpose.msra.mxu0 0.0
          %899 = vmatprep.subr.mxu0 0.0
          %900 = vmatpush1.xpose.msra.mxu0 0.0
          %901 = vmatprep.subr.mxu0 0.0
          %902 = vmatpush1.xpose.msra.mxu0 0.0
          %903 = vmatprep.subr.mxu0 0.0
          %904 = vmatpush1.xpose.msra.mxu0 0.0
          %905 = vmatprep.subr.mxu0 0.0
          %906 = vmatpush1.xpose.msra.mxu0 0.0
          %907 = vmatprep.subr.mxu0 0.0
          %908 = vmatpush1.xpose.msra.mxu0 0.0
          %909 = vmatprep.subr.mxu0 0.0
          %910 = vmatpush1.xpose.msra.mxu0 0.0
          %911 = vmatprep.subr.mxu0 0.0
          %912 = vmatpush1.xpose.msra.mxu0 0.0
          %913 = vmatprep.subr.mxu0 0.0
          %914 = vmatpush1.xpose.msra.mxu0 0.0
          %915 = vmatprep.subr.mxu0 0.0
          %916 = vmatpush1.xpose.msra.mxu0 0.0
          %917 = vmatprep.subr.mxu0 0.0
          %918 = vmatpush1.xpose.msra.mxu0 0.0
          %919 = vmatprep.subr.mxu0 0.0
          %920 = vmatpush1.xpose.msra.mxu0 0.0
          %921 = vmatprep.mubr.f32.mxu0 0.0
          %922 = vmatmul.mubr.f32.gmra.mrb[0].mxu0 %v833
          %v923 = vpop.f32.mrb[0].mxu0
          %v924 = vadd.f32 0.0, %v923
          %v925 = vpop.f32.mrb[0].mxu0
          %926 = vmatprep.mubr.f32.mxu0 0.0
          %927 = vmatmul.mubr.f32.gmra.mrb[0].mxu0 %v834
          %v928 = vpop.f32.mrb[0].mxu0
          %v929 = vadd.f32 0.0, %v928
          %v930 = vpop.f32.mrb[0].mxu0
          %931 = vdwg.mxu0
          %v932 = vld [vmem:[%s4] sm:$0x1]
          %v937 = vlaneseq
          %v938 = vand.u32 %v937, 127
          %v939 = vlaneseq
          %v940 = vshrl.u32 %v939, 7
          %v941 = vsub.s32 %v938, %v940
          %v942 = vrot.slane %v850, %v941
          %v943 = vadd.s32 %v938, 4294967288
          %v944 = vlaneseq
          %v945 = vshrl.u32 %v944, 7
          %v946 = vsub.s32 %v943, %v945
          %v947 = vrot.slane %v852, %v946
          %vm948 = vcmask 130112
          %v949 = vsel %vm948, %v947, %v942
          %v950 = vadd.s32 %v938, 4294967280
          %v951 = vlaneseq
          %v952 = vshrl.u32 %v951, 7
          %v953 = vsub.s32 %v950, %v952
          %v954 = vrot.slane %v854, %v953
          %vm955 = vcmask 195712
          %v956 = vsel %vm955, %v954, %v949
          %v957 = vadd.s32 %v938, 4294967272
          %v958 = vlaneseq
          %v959 = vshrl.u32 %v958, 7
          %v960 = vsub.s32 %v957, %v959
          %v961 = vrot.slane %v856, %v960
          %vm962 = vcmask 261312
          %v963 = vsel %vm962, %v961, %v956
          %vm964 = vcmask 1041409
          %vm965 = vcmask 1042434
          %v966 = vsel %vm965, %v963, %v963
          %vm967 = vcmask 1043459
          %v968 = vsel %vm967, %v963, %v966
          %vm969 = vcmask 1044484
          %v970 = vsel %vm969, %v963, %v968
          %vm971 = vcmask 1045509
          %v972 = vsel %vm971, %v963, %v970
          %vm973 = vcmask 1046534
          %v974 = vsel %vm973, %v963, %v972
          %vm975 = vcmask 1047559
          %v976 = vsel %vm975, %v963, %v974
          %v978 = vadd.f32 %v842, %v976
          %v979 = vadd.f32 %v844, %v976
          %v980 = vmul.f32 %v924, 2.0
          %v981 = vmul.f32 %v929, 2.0
          %v982 = vsub.f32 %v978, %v980
          %v983 = vsub.f32 %v979, %v981
          %v985 = vlaneseq
          %v986 = vshrl.u32 %v985, 7
          %v987 = vsub.s32 0, %v986
          %v988 = vrot.slane %v932, %v987
          %v990 = vmul.f32 %v988, %v982
          %v991 = vmul.f32 %v988, %v983
          %vm992 = vcmask 261120
          %v993 = vsel %vm992, %v990, -inf
          %994 = vmax.xlane.f32.xlu0 %v993
          %v995 = vpop.xlane.xlu0 %994
          %v996 = vsel %vm992, %v991, -inf
          %997 = vmax.xlane.f32.xlu0 %v996
          %v998 = vpop.xlane.xlu0 %997
          %v999 = vsub.f32 %v990, %v995
          %v1000 = vsub.f32 %v991, %v998
          %v1001 = vmul.f32 %v999, 1.442695
          %v1002 = vpow.pop %v1001
          %v1003 = vmul.f32 %v1000, 1.442695
          %v1004 = vpow.pop %v1003
          %v1005 = vsel %vm992, %v1002, 0.0
          %1006 = vadd.xlane.f32.xlu0 %v1005
          %v1007 = vpop.xlane.xlu0 %1006
          %v1008 = vsel %vm992, %v1004, 0.0
          %1009 = vadd.xlane.f32.xlu0 %v1008
          %v1010 = vpop.xlane.xlu0 %1009
          %v1011 = vrcp.pop %v1007
          %v1012 = vrcp.pop %v1010
          %v1013 = vmul.f32 %v1002, %v1011
          %v1014 = vmul.f32 %v1004, %v1012
          %v1015 = vpack.c.bf16 %v1014, %v1013
          %v1016 = vpack.c.bf16 %v834, %v833
          %1017 = vxpose.xlu0.c.b16.start [1/8] %v1015, 128
          %1018 = vxpose.xlu0.c.b16.cont [2/8] 0, 128
          %1019 = vxpose.xlu0.c.b16.cont [3/8] 0, 128
          %1020 = vxpose.xlu0.c.b16.cont [4/8] 0, 128
          %1021 = vxpose.xlu0.c.b16.cont [5/8] 0, 128
          %1022 = vxpose.xlu0.c.b16.cont [6/8] 0, 128
          %1023 = vxpose.xlu0.c.b16.cont [7/8] 0, 128
          %1024 = vxpose.xlu0.c.b16.end [8/8] 0, 128
          %v1025 = vpop.trf.xlu0
          %v1026 = vpop.trf.xlu0
          %v1027 = vpop.trf.xlu0
          %v1028 = vpop.trf.xlu0
          %v1029 = vpop.trf.xlu0
          %v1030 = vpop.trf.xlu0
          %v1031 = vpop.trf.xlu0
          %v1032 = vpop.trf.xlu0
          %vm1033 = vcmask 130048
          %v1035 = vsel %vm1033, %v1025, 0
          %v1038 = vsel %vm1033, %v1026, 0
          %1040 = vmatprep.subr.bf16.mxu0 0
          %1041 = vmatpush1.bf16.msra.mxu0 %v1016
          %1042 = vmatprep.subr.bf16.mxu0 0
          %1043 = vmatpush1.bf16.msra.mxu0 0
          %1044 = vmatprep.subr.bf16.mxu0 0
          %1045 = vmatpush1.bf16.msra.mxu0 0
          %1046 = vmatprep.subr.bf16.mxu0 0
          %1047 = vmatpush1.bf16.msra.mxu0 0
          %1048 = vmatprep.subr.bf16.mxu0 0
          %1049 = vmatpush1.bf16.msra.mxu0 0
          %1050 = vmatprep.subr.bf16.mxu0 0
          %1051 = vmatpush1.bf16.msra.mxu0 0
          %1052 = vmatprep.subr.bf16.mxu0 0
          %1053 = vmatpush1.bf16.msra.mxu0 0
          %1054 = vmatprep.subr.bf16.mxu0 0
          %1055 = vmatpush1.bf16.msra.mxu0 0
          %1056 = vmatprep.subr.bf16.mxu0 0
          %1057 = vmatpush1.bf16.msra.mxu0 0
          %1058 = vmatprep.subr.bf16.mxu0 0
          %1059 = vmatpush1.bf16.msra.mxu0 0
          %1060 = vmatprep.subr.bf16.mxu0 0
          %1061 = vmatpush1.bf16.msra.mxu0 0
          %1062 = vmatprep.subr.bf16.mxu0 0
          %1063 = vmatpush1.bf16.msra.mxu0 0
          %1064 = vmatprep.subr.bf16.mxu0 0
          %1065 = vmatpush1.bf16.msra.mxu0 0
          %1066 = vmatprep.subr.bf16.mxu0 0
          %1067 = vmatpush1.bf16.msra.mxu0 0
          %1068 = vmatprep.subr.bf16.mxu0 0
          %1069 = vmatpush1.bf16.msra.mxu0 0
          %1070 = vmatprep.subr.bf16.mxu0 0
          %1071 = vmatpush1.bf16.msra.mxu0 0
          %1072 = vmatprep.mubr.bf16.mxu0 0
          %1073 = vmatmul.mubr.bf16.gmra.mrb[0].mxu0 %v1035
          %v1074 = vpop.f32.mrb[0].mxu0
          %v1075 = vadd.f32 0.0, %v1074
          %v1076 = vpop.f32.mrb[0].mxu0
          %v1077 = vpop.f32.mrb[0].mxu0
          %v1078 = vadd.f32 0.0, %v1077
          %v1079 = vpop.f32.mrb[0].mxu0
          %1080 = vmatprep.mubr.bf16.mxu0 0
          %1081 = vmatmul.mubr.bf16.gmra.mrb[0].mxu0 %v1038
          %v1082 = vpop.f32.mrb[0].mxu0
          %v1083 = vadd.f32 0.0, %v1082
          %v1084 = vpop.f32.mrb[0].mxu0
          %v1085 = vpop.f32.mrb[0].mxu0
          %v1086 = vadd.f32 0.0, %v1085
          %v1087 = vpop.f32.mrb[0].mxu0
          %1088 = vdwg.mxu0
          %v1089 = vsel %vm992, %v1013, 0.0
          %v1090 = vsel %vm992, %v1014, 0.0
          %v1091 = vadd.f32 %v1089, %v1090
          %v1092 = vrot.slane %v1091, 4
          %v1093 = vadd.f32 %v1091, %v1092
          %v1094 = vrot.slane %v1093, 2
          %v1095 = vadd.f32 %v1093, %v1094
          %v1096 = vrot.slane %v1095, 1
          %v1097 = vadd.f32 %v1095, %v1096
          %1099 = vbcast.lane.b32.xlu0 %v1097, 256
          %v1100 = vpop.permute.xlu0 %1099
          %s1102 = sor.u32 256, 8
          %1103 = vbcast.lane.b32.xlu0 %v1097, %s1102
          %v1104 = vpop.permute.xlu0 %1103
          %s1106 = sor.u32 256, 16
          %1107 = vbcast.lane.b32.xlu0 %v1097, %s1106
          %v1108 = vpop.permute.xlu0 %1107
          %s1110 = sor.u32 256, 24
          %1111 = vbcast.lane.b32.xlu0 %v1097, %s1110
          %v1112 = vpop.permute.xlu0 %1111
          %v1113 = vmul.f32 %v1100, %v835
          %v1114 = vmul.f32 %v1104, %v836
          %v1115 = vmul.f32 %v1108, %v837
          %v1116 = vmul.f32 %v1112, %v838
          %v1117 = vsub.f32 %v1075, %v1113
          %v1118 = vsub.f32 %v1078, %v1114
          %v1119 = vsub.f32 %v1083, %v1115
          %v1120 = vsub.f32 %v1086, %v1116
          %v1121 = vmul.f32 %v1117, %v1117
          %v1122 = vmul.f32 %v1118, %v1118
          %v1123 = vmul.f32 %v1119, %v1119
          %v1124 = vmul.f32 %v1120, %v1120
          %1125 = vadd.xlane.f32.xlu0 %v1121
          %v1126 = vpop.xlane.xlu0 %1125
          %1127 = vadd.xlane.f32.xlu0 %v1122
          %v1128 = vpop.xlane.xlu0 %1127
          %1129 = vadd.xlane.f32.xlu0 %v1123
          %v1130 = vpop.xlane.xlu0 %1129
          %1131 = vadd.xlane.f32.xlu0 %v1124
          %v1132 = vpop.xlane.xlu0 %1131
          %v1133 = vadd.f32 %v1126, %v1128
          %v1134 = vadd.f32 %v1133, %v1130
          %v1135 = vadd.f32 %v1134, %v1132
          %v1136 = vrot.slane %v1135, 4
          %v1137 = vadd.f32 %v1135, %v1136
          %v1138 = vrot.slane %v1137, 2
          %v1139 = vadd.f32 %v1137, %v1138
          %v1140 = vrot.slane %v1139, 1
          %v1141 = vadd.f32 %v1139, %v1140
          %v1142 = vmax.f32 %v1141, 1e-24
          %v1143 = vrsqrt.pop %v1142
          %v1144 = vmul.f32 %v1117, %v1143
          %v1145 = vmul.f32 %v1118, %v1143
          %v1146 = vmul.f32 %v1119, %v1143
          %v1147 = vmul.f32 %v1120, %v1143
          %v1148 = vld [vmem:[%s5] sm:$0xff]
          %v1149 = vld [vmem:[%s5 + $0x8] sm:$0xff]
          %v1150 = vld [vmem:[%s5 + $0x10] sm:$0xff]
          %v1151 = vld [vmem:[%s5 + $0x18] sm:$0xff]
          %v1152 = vld [vmem:[%s5 + $0x20] sm:$0xff]
          %v1153 = vld [vmem:[%s5 + $0x28] sm:$0xff]
          %v1154 = vld [vmem:[%s5 + $0x30] sm:$0xff]
          %v1155 = vld [vmem:[%s5 + $0x38] sm:$0xff]
          %v1156 = vld [vmem:[%s5 + $0x40] sm:$0xff]
          %v1157 = vld [vmem:[%s5 + $0x48] sm:$0xff]
          %v1158 = vld [vmem:[%s5 + $0x50] sm:$0xff]
          %v1159 = vld [vmem:[%s5 + $0x58] sm:$0xff]
          %v1160 = vld [vmem:[%s5 + $0x60] sm:$0xff]
          %v1161 = vld [vmem:[%s5 + $0x68] sm:$0xff]
          %v1162 = vld [vmem:[%s5 + $0x70] sm:$0xff]
          %v1163 = vld [vmem:[%s5 + $0x78] sm:$0xff]
          %v1164 = vld [vmem:[%s5 + $0x80] sm:$0xff]
          %v1165 = vld [vmem:[%s5 + $0x88] sm:$0xff]
          %v1166 = vld [vmem:[%s5 + $0x90] sm:$0xff]
          %v1167 = vld [vmem:[%s5 + $0x98] sm:$0xff]
          %v1168 = vld [vmem:[%s5 + $0xa0] sm:$0xff]
          %v1169 = vld [vmem:[%s5 + $0xa8] sm:$0xff]
          %v1170 = vld [vmem:[%s5 + $0xb0] sm:$0xff]
          %v1171 = vld [vmem:[%s5 + $0xb8] sm:$0xff]
          %v1172 = vld [vmem:[%s5 + $0xc0] sm:$0xff]
          %v1173 = vld [vmem:[%s5 + $0xc8] sm:$0xff]
          %v1174 = vld [vmem:[%s5 + $0xd0] sm:$0xff]
          %v1175 = vld [vmem:[%s5 + $0xd8] sm:$0xff]
          %v1176 = vld [vmem:[%s5 + $0xe0] sm:$0xff]
          %v1177 = vld [vmem:[%s5 + $0xe8] sm:$0xff]
          %v1178 = vld [vmem:[%s5 + $0xf0] sm:$0xff]
          %v1179 = vld [vmem:[%s5 + $0xf8] sm:$0xff]
          %v1180 = vmul.f32 %v1144, %v1148
          %v1181 = vmul.f32 %v1145, %v1149
          %v1182 = vmul.f32 %v1146, %v1150
          %v1183 = vmul.f32 %v1147, %v1151
          %v1184 = vmul.f32 %v1144, %v1152
          %v1185 = vmul.f32 %v1145, %v1153
          %v1186 = vmul.f32 %v1146, %v1154
          %v1187 = vmul.f32 %v1147, %v1155
          %v1188 = vmul.f32 %v1144, %v1156
          %v1189 = vmul.f32 %v1145, %v1157
          %v1190 = vmul.f32 %v1146, %v1158
          %v1191 = vmul.f32 %v1147, %v1159
          %v1192 = vmul.f32 %v1144, %v1160
          %v1193 = vmul.f32 %v1145, %v1161
          %v1194 = vmul.f32 %v1146, %v1162
          %v1195 = vmul.f32 %v1147, %v1163
          %v1196 = vmul.f32 %v1144, %v1164
          %v1197 = vmul.f32 %v1145, %v1165
          %v1198 = vmul.f32 %v1146, %v1166
          %v1199 = vmul.f32 %v1147, %v1167
          %v1200 = vmul.f32 %v1144, %v1168
          %v1201 = vmul.f32 %v1145, %v1169
          %v1202 = vmul.f32 %v1146, %v1170
          %v1203 = vmul.f32 %v1147, %v1171
          %v1204 = vmul.f32 %v1144, %v1172
          %v1205 = vmul.f32 %v1145, %v1173
          %v1206 = vmul.f32 %v1146, %v1174
          %v1207 = vmul.f32 %v1147, %v1175
          %v1208 = vmul.f32 %v1144, %v1176
          %v1209 = vmul.f32 %v1145, %v1177
          %v1210 = vmul.f32 %v1146, %v1178
          %v1211 = vmul.f32 %v1147, %v1179
          %1212 = vadd.xlane.f32.xlu0 %v1180
          %v1213 = vpop.xlane.xlu0 %1212
          %1214 = vadd.xlane.f32.xlu0 %v1181
          %v1215 = vpop.xlane.xlu0 %1214
          %1216 = vadd.xlane.f32.xlu0 %v1182
          %v1217 = vpop.xlane.xlu0 %1216
          %1218 = vadd.xlane.f32.xlu0 %v1183
          %v1219 = vpop.xlane.xlu0 %1218
          %1220 = vadd.xlane.f32.xlu0 %v1184
          %v1221 = vpop.xlane.xlu0 %1220
          %1222 = vadd.xlane.f32.xlu0 %v1185
          %v1223 = vpop.xlane.xlu0 %1222
          %1224 = vadd.xlane.f32.xlu0 %v1186
          %v1225 = vpop.xlane.xlu0 %1224
          %1226 = vadd.xlane.f32.xlu0 %v1187
          %v1227 = vpop.xlane.xlu0 %1226
          %1228 = vadd.xlane.f32.xlu0 %v1188
          %v1229 = vpop.xlane.xlu0 %1228
          %1230 = vadd.xlane.f32.xlu0 %v1189
          %v1231 = vpop.xlane.xlu0 %1230
          %1232 = vadd.xlane.f32.xlu0 %v1190
          %v1233 = vpop.xlane.xlu0 %1232
          %1234 = vadd.xlane.f32.xlu0 %v1191
          %v1235 = vpop.xlane.xlu0 %1234
          %1236 = vadd.xlane.f32.xlu0 %v1192
          %v1237 = vpop.xlane.xlu0 %1236
          %1238 = vadd.xlane.f32.xlu0 %v1193
          %v1239 = vpop.xlane.xlu0 %1238
          %1240 = vadd.xlane.f32.xlu0 %v1194
          %v1241 = vpop.xlane.xlu0 %1240
          %1242 = vadd.xlane.f32.xlu0 %v1195
          %v1243 = vpop.xlane.xlu0 %1242
          %1244 = vadd.xlane.f32.xlu0 %v1196
          %v1245 = vpop.xlane.xlu0 %1244
          %1246 = vadd.xlane.f32.xlu0 %v1197
          %v1247 = vpop.xlane.xlu0 %1246
          %1248 = vadd.xlane.f32.xlu0 %v1198
          %v1249 = vpop.xlane.xlu0 %1248
          %1250 = vadd.xlane.f32.xlu0 %v1199
          %v1251 = vpop.xlane.xlu0 %1250
          %1252 = vadd.xlane.f32.xlu0 %v1200
          %v1253 = vpop.xlane.xlu0 %1252
          %1254 = vadd.xlane.f32.xlu0 %v1201
          %v1255 = vpop.xlane.xlu0 %1254
          %1256 = vadd.xlane.f32.xlu0 %v1202
          %v1257 = vpop.xlane.xlu0 %1256
          %1258 = vadd.xlane.f32.xlu0 %v1203
          %v1259 = vpop.xlane.xlu0 %1258
          %1260 = vadd.xlane.f32.xlu0 %v1204
          %v1261 = vpop.xlane.xlu0 %1260
          %1262 = vadd.xlane.f32.xlu0 %v1205
          %v1263 = vpop.xlane.xlu0 %1262
          %1264 = vadd.xlane.f32.xlu0 %v1206
          %v1265 = vpop.xlane.xlu0 %1264
          %1266 = vadd.xlane.f32.xlu0 %v1207
          %v1267 = vpop.xlane.xlu0 %1266
          %1268 = vadd.xlane.f32.xlu0 %v1208
          %v1269 = vpop.xlane.xlu0 %1268
          %1270 = vadd.xlane.f32.xlu0 %v1209
          %v1271 = vpop.xlane.xlu0 %1270
          %1272 = vadd.xlane.f32.xlu0 %v1210
          %v1273 = vpop.xlane.xlu0 %1272
          %1274 = vadd.xlane.f32.xlu0 %v1211
          %v1275 = vpop.xlane.xlu0 %1274
          %v1308 = vlaneseq
          %v1309 = vshrl.u32 %v1308, 7
          %v1310 = vsub.s32 %v938, %v1309
          %v1311 = vrot.slane %v1213, %v1310
          %v1312 = vlaneseq
          %v1313 = vshrl.u32 %v1312, 7
          %v1314 = vsub.s32 %v943, %v1313
          %v1315 = vrot.slane %v1215, %v1314
          %v1316 = vsel %vm948, %v1315, %v1311
          %v1317 = vlaneseq
          %v1318 = vshrl.u32 %v1317, 7
          %v1319 = vsub.s32 %v950, %v1318
          %v1320 = vrot.slane %v1217, %v1319
          %v1321 = vsel %vm955, %v1320, %v1316
          %v1322 = vlaneseq
          %v1323 = vshrl.u32 %v1322, 7
          %v1324 = vsub.s32 %v957, %v1323
          %v1325 = vrot.slane %v1219, %v1324
          %v1326 = vsel %vm962, %v1325, %v1321
          %v1327 = vlaneseq
          %v1328 = vshrl.u32 %v1327, 7
          %v1329 = vsub.s32 %v938, %v1328
          %v1330 = vrot.slane %v1221, %v1329
          %v1331 = vlaneseq
          %v1332 = vshrl.u32 %v1331, 7
          %v1333 = vsub.s32 %v943, %v1332
          %v1334 = vrot.slane %v1223, %v1333
          %v1335 = vsel %vm948, %v1334, %v1330
          %v1336 = vlaneseq
          %v1337 = vshrl.u32 %v1336, 7
          %v1338 = vsub.s32 %v950, %v1337
          %v1339 = vrot.slane %v1225, %v1338
          %v1340 = vsel %vm955, %v1339, %v1335
          %v1341 = vlaneseq
          %v1342 = vshrl.u32 %v1341, 7
          %v1343 = vsub.s32 %v957, %v1342
          %v1344 = vrot.slane %v1227, %v1343
          %v1345 = vsel %vm962, %v1344, %v1340
          %v1346 = vlaneseq
          %v1347 = vshrl.u32 %v1346, 7
          %v1348 = vsub.s32 %v938, %v1347
          %v1349 = vrot.slane %v1229, %v1348
          %v1350 = vlaneseq
          %v1351 = vshrl.u32 %v1350, 7
          %v1352 = vsub.s32 %v943, %v1351
          %v1353 = vrot.slane %v1231, %v1352
          %v1354 = vsel %vm948, %v1353, %v1349
          %v1355 = vlaneseq
          %v1356 = vshrl.u32 %v1355, 7
          %v1357 = vsub.s32 %v950, %v1356
          %v1358 = vrot.slane %v1233, %v1357
          %v1359 = vsel %vm955, %v1358, %v1354
          %v1360 = vlaneseq
          %v1361 = vshrl.u32 %v1360, 7
          %v1362 = vsub.s32 %v957, %v1361
          %v1363 = vrot.slane %v1235, %v1362
          %v1364 = vsel %vm962, %v1363, %v1359
          %v1365 = vlaneseq
          %v1366 = vshrl.u32 %v1365, 7
          %v1367 = vsub.s32 %v938, %v1366
          %v1368 = vrot.slane %v1237, %v1367
          %v1369 = vlaneseq
          %v1370 = vshrl.u32 %v1369, 7
          %v1371 = vsub.s32 %v943, %v1370
          %v1372 = vrot.slane %v1239, %v1371
          %v1373 = vsel %vm948, %v1372, %v1368
          %v1374 = vlaneseq
          %v1375 = vshrl.u32 %v1374, 7
          %v1376 = vsub.s32 %v950, %v1375
          %v1377 = vrot.slane %v1241, %v1376
          %v1378 = vsel %vm955, %v1377, %v1373
          %v1379 = vlaneseq
          %v1380 = vshrl.u32 %v1379, 7
          %v1381 = vsub.s32 %v957, %v1380
          %v1382 = vrot.slane %v1243, %v1381
          %v1383 = vsel %vm962, %v1382, %v1378
          %v1384 = vlaneseq
          %v1385 = vshrl.u32 %v1384, 7
          %v1386 = vsub.s32 %v938, %v1385
          %v1387 = vrot.slane %v1245, %v1386
          %v1388 = vlaneseq
          %v1389 = vshrl.u32 %v1388, 7
          %v1390 = vsub.s32 %v943, %v1389
          %v1391 = vrot.slane %v1247, %v1390
          %v1392 = vsel %vm948, %v1391, %v1387
          %v1393 = vlaneseq
          %v1394 = vshrl.u32 %v1393, 7
          %v1395 = vsub.s32 %v950, %v1394
          %v1396 = vrot.slane %v1249, %v1395
          %v1397 = vsel %vm955, %v1396, %v1392
          %v1398 = vlaneseq
          %v1399 = vshrl.u32 %v1398, 7
          %v1400 = vsub.s32 %v957, %v1399
          %v1401 = vrot.slane %v1251, %v1400
          %v1402 = vsel %vm962, %v1401, %v1397
          %v1403 = vlaneseq
          %v1404 = vshrl.u32 %v1403, 7
          %v1405 = vsub.s32 %v938, %v1404
          %v1406 = vrot.slane %v1253, %v1405
          %v1407 = vlaneseq
          %v1408 = vshrl.u32 %v1407, 7
          %v1409 = vsub.s32 %v943, %v1408
          %v1410 = vrot.slane %v1255, %v1409
          %v1411 = vsel %vm948, %v1410, %v1406
          %v1412 = vlaneseq
          %v1413 = vshrl.u32 %v1412, 7
          %v1414 = vsub.s32 %v950, %v1413
          %v1415 = vrot.slane %v1257, %v1414
          %v1416 = vsel %vm955, %v1415, %v1411
          %v1417 = vlaneseq
          %v1418 = vshrl.u32 %v1417, 7
          %v1419 = vsub.s32 %v957, %v1418
          %v1420 = vrot.slane %v1259, %v1419
          %v1421 = vsel %vm962, %v1420, %v1416
          %v1422 = vlaneseq
          %v1423 = vshrl.u32 %v1422, 7
          %v1424 = vsub.s32 %v938, %v1423
          %v1425 = vrot.slane %v1261, %v1424
          %v1426 = vlaneseq
          %v1427 = vshrl.u32 %v1426, 7
          %v1428 = vsub.s32 %v943, %v1427
          %v1429 = vrot.slane %v1263, %v1428
          %v1430 = vsel %vm948, %v1429, %v1425
          %v1431 = vlaneseq
          %v1432 = vshrl.u32 %v1431, 7
          %v1433 = vsub.s32 %v950, %v1432
          %v1434 = vrot.slane %v1265, %v1433
          %v1435 = vsel %vm955, %v1434, %v1430
          %v1436 = vlaneseq
          %v1437 = vshrl.u32 %v1436, 7
          %v1438 = vsub.s32 %v957, %v1437
          %v1439 = vrot.slane %v1267, %v1438
          %v1440 = vsel %vm962, %v1439, %v1435
          %v1441 = vlaneseq
          %v1442 = vshrl.u32 %v1441, 7
          %v1443 = vsub.s32 %v938, %v1442
          %v1444 = vrot.slane %v1269, %v1443
          %v1445 = vlaneseq
          %v1446 = vshrl.u32 %v1445, 7
          %v1447 = vsub.s32 %v943, %v1446
          %v1448 = vrot.slane %v1271, %v1447
          %v1449 = vsel %vm948, %v1448, %v1444
          %v1450 = vlaneseq
          %v1451 = vshrl.u32 %v1450, 7
          %v1452 = vsub.s32 %v950, %v1451
          %v1453 = vrot.slane %v1273, %v1452
          %v1454 = vsel %vm955, %v1453, %v1449
          %v1455 = vlaneseq
          %v1456 = vshrl.u32 %v1455, 7
          %v1457 = vsub.s32 %v957, %v1456
          %v1458 = vrot.slane %v1275, %v1457
          %v1459 = vsel %vm962, %v1458, %v1454
          %v1460 = vsel %vm964, %v1345, %v1326
          %v1461 = vsel %vm965, %v1364, %v1460
          %v1462 = vsel %vm967, %v1383, %v1461
          %v1463 = vsel %vm969, %v1402, %v1462
          %v1464 = vsel %vm971, %v1421, %v1463
          %v1465 = vsel %vm973, %v1440, %v1464
          %v1466 = vsel %vm975, %v1459, %v1465
          %v1468 = vsel %vm992, %v1466, 0.0
          %1469 = vadd.xlane.f32.xlu0 %v1468
          %v1470 = vpop.xlane.xlu0 %1469
          %v1471 = vld [vmem:[%s6] sm:$0x1]
          %v1473 = vlaneseq
          %v1474 = vshrl.u32 %v1473, 7
          %v1475 = vsub.s32 0, %v1474
          %v1476 = vrot.slane %v1471, %v1475
          %1478 = vbcast.lane.b32.xlu0 %v1476, 256
          %v1479 = vpop.permute.xlu0 %1478
          %v1481 = vadd.f32 %v1470, %v1479
          %1483 = vset.pattern.permute.xlu0 0
          %1484 = vperm.xlu0 %1483, %v1481
          %v1485 = vpop.permute.xlu0 %1484
          %v1486 = vlaneseq
          %v1487 = vshrl.u32 %v1486, 7
          %v1488 = vsub.s32 %v938, %v1487
          %v1489 = vrot.slane %v1485, %v1488
          %vm1491 = vcmask 57344
          %1492 = vst.msk [vmem:[%s293] sm:$0x1] %vm1491, %v1489
        $region56: #{tpu_custom_call.1} parent=47 // pred_fallthru
          _
        %s1493 = sand.u32 %s195, 1
        %s1494 = scalar_lea.sflag [#allocation4], %s1493
        %s1495 = sand.u32 %s195, 1
        %s1496 = scalar_lea.vmem [#allocation3], %s1495
        // Predicated region
        $region57: #{tpu_custom_call.1} parent=47 // pred_check
          %p1497 = pneg %p205
        $region58: #{tpu_custom_call.1} parent=47 // pred_check_branch
          %1499 = sbr.rel (%p1497) target = $region60
        $region59: #{tpu_custom_call.1} parent=47 // pred_region
          %s1501 = ssub.s32 16, 16
          %1502 = vsyncadd %s1494, %s1501
          %s1503 = smul.addr %s25, 16
          %s1504 = scalar_lea.hbm %s7, %s1503
          %s1506 = sshll.u32 %s1496, 4
          %s1507 = int_to_ptr.vmem [resolvable:$true] %s1506
          %1509 = dma.vmem_to_hbm [thread:$0]  %s1507, 16, %s1504, %s1494
        $region60: #{tpu_custom_call.1} parent=47 // pred_fallthru
          _
      $region48: #{tpu_custom_call.1} parent=5 // pred_fallthru
        _
      %p1510 = scmp.le.s32.totalorder 2, %s16
      // Predicated region
      $region61: #{tpu_custom_call.1} parent=5 // pred_check
        %p1511 = pneg %p1510
      $region62: #{tpu_custom_call.1} parent=5 // pred_check_branch
        %1513 = sbr.rel (%p1511) target = $region64
      $region63: #{tpu_custom_call.1} parent=5 // pred_region
        %s1514 = ssub.s32 %s16, 2
        // Predicated region
        $region65: #{tpu_custom_call.1} parent=63 // pred_check
          %p1515 = pneg %p211
        $region66: #{tpu_custom_call.1} parent=63 // pred_check_branch
          %1517 = sbr.rel (%p1515) target = $region68
        $region67: #{tpu_custom_call.1} parent=63 // pred_region
          %s1518 = sand.u32 %s196, 1
          %s1519 = scalar_lea.sflag [#allocation4], %s1518
          %s1520 = sand.u32 %s196, 1
          %s1521 = scalar_lea.vmem [#allocation3], %s1520
          %1522 = dma.done %s1519, 16
        $region68: #{tpu_custom_call.1} parent=63 // pred_fallthru
          _
      $region64: #{tpu_custom_call.1} parent=5 // pred_fallthru
        _
    $region6: #{tpu_custom_call.1} parent=1 // loop_footer
      %s20 = sadd.s32 1, %s16
    $region7: #{tpu_custom_call.1} parent=1 // loop_footer_branch
      %15 = sbr.rel target = $region3
    $region8: #{tpu_custom_call.1} parent=1 // loop_exit
      _
    %1523 = vsyncpa [#allocation4], 1
    %s1524 = scalar_lea.sflag [#allocation4], 1
    %1525 = vsyncpa %s1524, 1

</llo_original>
